<compile_context>
chip_gen: v7x
topology: tpu7x:2x2x1
jax: 0.10.0
libtpu: 0.0.40
codegen_flags: <defaults>
</compile_context>

<pallas_src>
import functools

import jax
import jax.numpy as jnp
from jax.experimental import pallas as pl
from jax.experimental.pallas import tpu as pltpu

_BN_EPS = 1e-5
_LANE = 128      # feature padding granularity (lane width)
_TILE_N = 256    # node padding granularity (row/reduction tiles are multiples of this)


def _round_up(x, m):
    return (x + m - 1) // m * m


def _pad2(a, rows, cols):
    return jnp.pad(a, ((0, rows - a.shape[0]), (0, cols - a.shape[1])))


def _choose_tm(np_nodes):
    # Largest row tile <= 1024 that divides NP while keeping >= 2 row tiles
    # (so both v7x TensorCores get parallel work); fall back to a single tile
    # only when the whole graph fits in one 256-row tile.
    for cand in (1024, 512, 256):
        if np_nodes % cand == 0 and np_nodes // cand >= 2:
            return cand
    return min(np_nodes, 1024)


def _choose_tk(np_nodes):
    for cand in (512, 256):
        if np_nodes % cand == 0:
            return cand
    return np_nodes


def _choose_tn(coutp):
    # Full padded C_out (capped ~512) so A_hat is streamed exactly once per row tile.
    if coutp <= 512:
        return coutp
    for cand in (512, 384, 256, 128):
        if coutp % cand == 0:
            return cand
    return _LANE


# ----------------------------------------------------------------------------
# Fused per-layer kernel.
#   acc[i, j] += A[i, k] @ (X[k, :] @ W^T[:, j])      (f32 accumulator in VMEM)
#   at k == last:  out = relu_maybe(acc * scale + shift)   (cast to out dtype)
# ----------------------------------------------------------------------------
def _gcn_layer_kernel(a_ref, x_ref, wt_ref, scale_ref, shift_ref, o_ref, acc_ref, *, relu):
    k = pl.program_id(2)

    @pl.when(k == 0)
    def _():
        acc_ref[...] = jnp.zeros_like(acc_ref)

    # H_k = X_k @ W^T  -> (TK, TN), f32 MXU accumulate, cast back to bf16 for aggregation.
    h_k = jnp.dot(x_ref[...], wt_ref[...], preferred_element_type=jnp.float32)
    acc_ref[...] += jnp.dot(a_ref[...], h_k.astype(jnp.bfloat16),
                            preferred_element_type=jnp.float32)

    @pl.when(k == pl.num_programs(2) - 1)
    def _():
        out = acc_ref[...] * scale_ref[...] + shift_ref[...]
        if relu:
            out = jnp.maximum(out, 0.0)
        o_ref[...] = out.astype(o_ref.dtype)


def gcn_layer(a_hat, x, wt, scale, shift, *, relu, out_dtype):
    """One GCN layer: relu_maybe((A_hat @ (X @ W^T)) * scale + shift).

    a_hat : [NP, NP]      bf16 (padded, zero rows/cols for padded nodes)
    x     : [NP, CinP]    bf16 (padded)
    wt    : [CinP, CoutP] bf16 (padded W^T)
    scale, shift : [1, CoutP] f32 (padded with zeros)
    out   : [NP, CoutP]   out_dtype (bf16 for intermediate layers, f32 for the last)
    """
    NP, NP2 = a_hat.shape
    NP3, CinP = x.shape
    CinP2, CoutP = wt.shape
    assert NP == NP2 == NP3 and CinP == CinP2

    tm = _choose_tm(NP)
    tk = _choose_tk(NP)
    tn = _choose_tn(CoutP)
    assert NP % tm == 0 and NP % tk == 0 and CoutP % tn == 0 and CinP % _LANE == 0

    grid = (NP // tm, CoutP // tn, NP // tk)

    flops = 2 * NP * NP * CoutP + 2 * NP * CinP * CoutP * (NP // tm)
    out_itemsize = jnp.dtype(out_dtype).itemsize
    bytes_accessed = (NP * NP * 2                       # A_hat streamed once (tn == CoutP)
                      + NP * CinP * 2 * (CoutP // tn)   # X re-read per j tile
                      + CinP * CoutP * 2
                      + NP * CoutP * out_itemsize)

    # Double-buffered VMEM footprint of the pipelined tiles + resident accumulator.
    vmem_bytes = (2 * (tm * tk * 2 + tk * CinP * 2 + CinP * tn * 2
                       + 2 * tn * 4 + tm * tn * out_itemsize)
                  + tm * tn * 4)
    vmem_limit = int(min(96 * 1024 * 1024, max(2 * vmem_bytes, 16 * 1024 * 1024)))

    return pl.pallas_call(
        functools.partial(_gcn_layer_kernel, relu=relu),
        out_shape=jax.ShapeDtypeStruct((NP, CoutP), out_dtype),
        grid_spec=pltpu.PrefetchScalarGridSpec(
            num_scalar_prefetch=0,
            grid=grid,
            in_specs=[
                pl.BlockSpec((tm, tk), lambda i, j, k: (i, k)),     # A_hat tile
                pl.BlockSpec((tk, CinP), lambda i, j, k: (k, 0)),   # X tile (full feat width)
                pl.BlockSpec((CinP, tn), lambda i, j, k: (0, j)),   # W^T tile (VMEM-resident)
                pl.BlockSpec((1, tn), lambda i, j, k: (0, j)),      # per-column scale
                pl.BlockSpec((1, tn), lambda i, j, k: (0, j)),      # per-column shift
            ],
            out_specs=pl.BlockSpec((tm, tn), lambda i, j, k: (i, j)),
            scratch_shapes=[pltpu.VMEM((tm, tn), jnp.float32)],
        ),
        compiler_params=pltpu.CompilerParams(
            dimension_semantics=("parallel", "parallel", "arbitrary"),
            vmem_limit_bytes=vmem_limit,
        ),
        cost_estimate=pl.CostEstimate(flops=flops, transcendentals=0,
                                      bytes_accessed=bytes_accessed),
    )(a_hat, x, wt, scale, shift)


# ----------------------------------------------------------------------------
# Graph prep (hoist out of the per-forward path when the graph is static):
# PyG GCNConv default normalization (add self loops, symmetric norm), built and
# padded directly in bf16 — no transient f32 N^2 pad/cast pass before the kernel.
# TODO(synk): replace dense A_hat with a block-sparse formulation for real OGB graphs.
# ----------------------------------------------------------------------------
def prepare_graph(edge_index, num_nodes, edge_weight=None):
    np_nodes = _round_up(num_nodes, _TILE_N)
    src, dst = edge_index[0], edge_index[1]
    if edge_weight is None:
        edge_weight = jnp.ones((src.shape[0],), jnp.float32)
    a = jnp.zeros((num_nodes, num_nodes), jnp.float32).at[dst, src].add(edge_weight)
    a = a + jnp.eye(num_nodes, dtype=jnp.float32)
    deg = a.sum(axis=1)
    deg_inv_sqrt = jnp.where(deg > 0, jax.lax.rsqrt(deg), 0.0)
    a_hat = deg_inv_sqrt[:, None] * a * deg_inv_sqrt[None, :]
    return _pad2(a_hat.astype(jnp.bfloat16), np_nodes, np_nodes), np_nodes


def gcn_norm_dense(edge_index, edge_weight, num_nodes):
    src, dst = edge_index[0], edge_index[1]
    if edge_weight is None:
        edge_weight = jnp.ones((src.shape[0],), jnp.float32)
    a = jnp.zeros((num_nodes, num_nodes), jnp.float32).at[dst, src].add(edge_weight)
    a = a + jnp.eye(num_nodes, dtype=jnp.float32)
    deg = a.sum(axis=1)
    deg_inv_sqrt = jnp.where(deg > 0, jax.lax.rsqrt(deg), 0.0)
    return deg_inv_sqrt[:, None] * a * deg_inv_sqrt[None, :]


# ----------------------------------------------------------------------------
# Parameter init (deterministic, matches module shapes)
# ----------------------------------------------------------------------------
def init_params(key, in_channels, hidden_channels, out_channels, num_layers):
    dims = [in_channels] + [hidden_channels] * (num_layers - 1) + [out_channels]
    convs, bns = [], []
    for i in range(num_layers):
        key, kw = jax.random.split(key)
        fan_in, fan_out = dims[i], dims[i + 1]
        limit = (6.0 / (fan_in + fan_out)) ** 0.5          # glorot uniform (PyG GCNConv lin)
        w = jax.random.uniform(kw, (fan_out, fan_in), jnp.float32, -limit, limit)
        b = jnp.zeros((fan_out,), jnp.float32)             # GCNConv bias init: zeros
        convs.append({"weight": w, "bias": b})
        if i < num_layers - 1:
            key, k1, k2, k3 = jax.random.split(key, 4)
            bns.append({
                "gamma": 1.0 + 0.1 * jax.random.normal(k1, (fan_out,), jnp.float32),
                "beta": 0.1 * jax.random.normal(k2, (fan_out,), jnp.float32),
                "running_mean": 0.1 * jax.random.normal(k3, (fan_out,), jnp.float32),
                "running_var": jnp.ones((fan_out,), jnp.float32),
            })
    return {"convs": convs, "bns": bns}


# ----------------------------------------------------------------------------
# One-time parameter prep (hoisted out of the hot path): transpose + pad weights to
# bf16, fold BatchNorm (running stats) + bias into per-column scale/shift.
# ----------------------------------------------------------------------------
def prepare_params(params):
    n_layers = len(params["convs"])
    prepped = []
    for i, conv in enumerate(params["convs"]):
        w = conv["weight"]                                  # [C_out, C_in]
        b = conv["bias"]
        c_out, c_in = w.shape
        cinp = _round_up(c_in, _LANE)
        coutp = _round_up(c_out, _LANE)
        wt = _pad2(w.T.astype(jnp.bfloat16), cinp, coutp)
        if i < n_layers - 1:
            bn = params["bns"][i]
            scale = bn["gamma"] / jnp.sqrt(bn["running_var"] + _BN_EPS)
            shift = (b - bn["running_mean"]) * scale + bn["beta"]
            relu = True
        else:
            scale = jnp.ones((c_out,), jnp.float32)
            shift = b
            relu = False
        scale = _pad2(scale.reshape(1, c_out).astype(jnp.float32), 1, coutp)
        shift = _pad2(shift.reshape(1, c_out).astype(jnp.float32), 1, coutp)
        prepped.append({"wt": wt, "scale": scale, "shift": shift, "relu": relu,
                        "c_in": c_in, "c_out": c_out})
    return prepped


# ----------------------------------------------------------------------------
# GCN forward (eval mode: dropout = identity, BN uses running stats).
# Pass `graph=prepare_graph(...)` to hoist A_hat construction out of the hot path.
# ----------------------------------------------------------------------------
def gcn_forward(prepped, x, edge_index, relations=None, edge_weight=None, graph=None):
    del relations  # unused in the reference forward as well
    num_nodes, in_channels = x.shape
    if graph is None:
        graph = prepare_graph(edge_index, num_nodes, edge_weight)
    a_hat, np_nodes = graph

    cinp0 = _round_up(in_channels, _LANE)
    h = _pad2(x.astype(jnp.bfloat16), np_nodes, cinp0)
    n_layers = len(prepped)
    out_channels = prepped[-1]["c_out"]
    for li, layer in enumerate(prepped):
        last = li == n_layers - 1
        # Intermediate layers stay bf16 end-to-end (kernel epilogue casts); final layer f32.
        h = gcn_layer(a_hat, h, layer["wt"], layer["scale"], layer["shift"],
                      relu=layer["relu"],
                      out_dtype=jnp.float32 if last else jnp.bfloat16)
        # TODO(synk): F.dropout in training mode not implemented (eval-mode identity).
    return h[:num_nodes, :out_channels]


# Pure-JAX reference with matching bf16 input rounding (same math, no Pallas).
def gcn_forward_ref(params, x, edge_index, relations=None, edge_weight=None):
    num_nodes = x.shape[0]
    a_hat = gcn_norm_dense(edge_index, edge_weight, num_nodes)
    a_bf = a_hat.astype(jnp.bfloat16).astype(jnp.float32)
    n_layers = len(params["convs"])
    h = x.astype(jnp.float32)
    for i, conv in enumerate(params["convs"]):
        w, b = conv["weight"], conv["bias"]
        h_bf = h.astype(jnp.bfloat16).astype(jnp.float32)
        w_bf = w.astype(jnp.bfloat16).astype(jnp.float32)
        hw = (h_bf @ w_bf.T).astype(jnp.bfloat16).astype(jnp.float32)
        h = a_bf @ hw + b
        if i < n_layers - 1:
            bn = params["bns"][i]
            h = (h - bn["running_mean"]) / jnp.sqrt(bn["running_var"] + _BN_EPS)
            h = h * bn["gamma"] + bn["beta"]
            h = jnp.maximum(h, 0.0)
    return h


if __name__ == "__main__":
    key = jax.random.PRNGKey(0)

    # Small graph: 600 nodes, 2400 directed edges, 48 -> 160 -> 160 -> 10 features.
    # Node dim pads to 768 (3 row tiles x 3 reduction tiles), features pad to 128/256.
    num_nodes, num_edges = 600, 2400
    in_channels, hidden_channels, out_channels, num_layers = 48, 160, 10, 3

    key, kx, ke, kp = jax.random.split(key, 4)
    x = jax.random.normal(kx, (num_nodes, in_channels), jnp.float32)
    edge_index = jax.random.randint(ke, (2, num_edges), 0, num_nodes, jnp.int32)
    relations = None  # unused by the forward pass

    params = init_params(kp, in_channels, hidden_channels, out_channels, num_layers)
    prepped = prepare_params(params)
    graph = prepare_graph(edge_index, num_nodes)   # hoisted A_hat prep (static graph)

    out = jax.block_until_ready(gcn_forward(prepped, x, edge_index, relations, graph=graph))
    ref = jax.block_until_ready(gcn_forward_ref(params, x, edge_index, relations))

    assert out.shape == (num_nodes, out_channels)
    assert jnp.allclose(out, ref, atol=2e-2, rtol=2e-2), "Pallas output mismatch vs JAX reference"

    print("KERNEL_OK")
</pallas_src>

<mosaic_0001>
module attributes {stable_mosaic.version = 11 : i64} {
  func.func @_gcn_layer_kernel(%arg0: i32, %arg1: i32, %arg2: i32, %arg3: memref<256x256xbf16, #tpu.memory_space<vmem>>, %arg4: memref<256x128xbf16, #tpu.memory_space<vmem>>, %arg5: memref<128x256xbf16, #tpu.memory_space<vmem>>, %arg6: memref<1x256xf32, #tpu.memory_space<vmem>>, %arg7: memref<1x256xf32, #tpu.memory_space<vmem>>, %arg8: memref<256x256xbf16, #tpu.memory_space<vmem>>, %arg9: memref<256x256xf32, #tpu.memory_space<vmem>>) attributes {dimension_semantics = [#tpu.dimension_semantics<parallel>, #tpu.dimension_semantics<parallel>, #tpu.dimension_semantics<arbitrary>], iteration_bounds = array<i64: 3, 1, 3>, scalar_prefetch = 0 : i64, scratch_operands = 1 : i64, tpu.core_type = #tpu.core_type<tc>, window_params = [{transform_indices = @transform_0, window_bounds = array<i64: 256, 256>}, {transform_indices = @transform_1, window_bounds = array<i64: 256, 128>}, {transform_indices = @transform_2, window_bounds = array<i64: 128, 256>}, {transform_indices = @transform_3, window_bounds = array<i64: 1, 256>}, {transform_indices = @transform_4, window_bounds = array<i64: 1, 256>}, {transform_indices = @transform_5, window_bounds = array<i64: 256, 256>}]} {
    %c0_i32 = arith.constant 0 : i32
    %0 = arith.cmpi eq, %arg2, %c0_i32 : i32
    %1 = arith.extui %0 : i1 to i32
    %c0_i32_0 = arith.constant 0 : i32
    %2 = arith.cmpi ne, %1, %c0_i32_0 : i32
    scf.if %2 {
      %cst_12 = arith.constant 0.000000e+00 : f32
      %15 = vector.broadcast %cst_12 : f32 to vector<256x256xf32>
      %c0_13 = arith.constant 0 : index
      %c0_14 = arith.constant 0 : index
      %16 = vector.load %arg9[%c0_13, %c0_14] : memref<256x256xf32, #tpu.memory_space<vmem>>, vector<256x256xf32>
      tpu.vector_store %arg9[%c0_13, %c0_14], %15 {strides = array<i32>} : memref<256x256xf32, #tpu.memory_space<vmem>>, vector<256x256xf32>,
    } else {
    }
    %c0 = arith.constant 0 : index
    %c0_1 = arith.constant 0 : index
    %3 = vector.load %arg4[%c0, %c0_1] : memref<256x128xbf16, #tpu.memory_space<vmem>>, vector<256x128xbf16>
    %c0_2 = arith.constant 0 : index
    %c0_3 = arith.constant 0 : index
    %4 = vector.load %arg5[%c0_2, %c0_3] : memref<128x256xbf16, #tpu.memory_space<vmem>>, vector<128x256xbf16>
    %cst = arith.constant dense<0.000000e+00> : vector<256x256xf32>
    %5 = tpu.matmul %3, %4, %cst {dimension_numbers = #tpu.dot_dimension_numbers<[1], [0], [0], [1], [0, 0, 1, 1], [], []>} : vector<256x128xbf16>, vector<128x256xbf16>, vector<256x256xf32> -> vector<256x256xf32>
    %c0_4 = arith.constant 0 : index
    %c0_5 = arith.constant 0 : index
    %6 = vector.load %arg9[%c0_4, %c0_5] : memref<256x256xf32, #tpu.memory_space<vmem>>, vector<256x256xf32>
    %c0_6 = arith.constant 0 : index
    %c0_7 = arith.constant 0 : index
    %7 = vector.load %arg3[%c0_6, %c0_7] : memref<256x256xbf16, #tpu.memory_space<vmem>>, vector<256x256xbf16>
    %8 = arith.truncf %5 : vector<256x256xf32> to vector<256x256xbf16>
    %cst_8 = arith.constant dense<0.000000e+00> : vector<256x256xf32>
    %9 = tpu.matmul %7, %8, %cst_8 {dimension_numbers = #tpu.dot_dimension_numbers<[1], [0], [0], [1], [0, 0, 1, 1], [], []>} : vector<256x256xbf16>, vector<256x256xbf16>, vector<256x256xf32> -> vector<256x256xf32>
    %10 = arith.addf %6, %9 : vector<256x256xf32>
    %c0_9 = arith.constant 0 : index
    %c0_10 = arith.constant 0 : index
    %11 = vector.load %arg9[%c0_9, %c0_10] : memref<256x256xf32, #tpu.memory_space<vmem>>, vector<256x256xf32>
    tpu.vector_store %arg9[%c0_9, %c0_10], %10 {strides = array<i32>} : memref<256x256xf32, #tpu.memory_space<vmem>>, vector<256x256xf32>,
    %c2_i32 = arith.constant 2 : i32
    %12 = arith.cmpi eq, %arg2, %c2_i32 : i32
    %13 = arith.extui %12 : i1 to i32
    %c0_i32_11 = arith.constant 0 : i32
    %14 = arith.cmpi ne, %13, %c0_i32_11 : i32
    scf.if %14 {
      %c0_12 = arith.constant 0 : index
      %c0_13 = arith.constant 0 : index
      %15 = vector.load %arg9[%c0_12, %c0_13] : memref<256x256xf32, #tpu.memory_space<vmem>>, vector<256x256xf32>
      %c0_14 = arith.constant 0 : index
      %c0_15 = arith.constant 0 : index
      %16 = vector.load %arg6[%c0_14, %c0_15] : memref<1x256xf32, #tpu.memory_space<vmem>>, vector<1x256xf32>
      %17 = vector.broadcast %16 : vector<1x256xf32> to vector<256x256xf32>
      %18 = arith.mulf %15, %17 : vector<256x256xf32>
      %c0_16 = arith.constant 0 : index
      %c0_17 = arith.constant 0 : index
      %19 = vector.load %arg7[%c0_16, %c0_17] : memref<1x256xf32, #tpu.memory_space<vmem>>, vector<1x256xf32>
      %20 = vector.broadcast %19 : vector<1x256xf32> to vector<256x256xf32>
      %21 = arith.addf %18, %20 : vector<256x256xf32>
      %cst_18 = arith.constant 0.000000e+00 : f32
      %22 = vector.broadcast %cst_18 : f32 to vector<256x256xf32>
      %23 = arith.maximumf %21, %22 : vector<256x256xf32>
      %24 = arith.truncf %23 : vector<256x256xf32> to vector<256x256xbf16>
      %c0_19 = arith.constant 0 : index
      %c0_20 = arith.constant 0 : index
      %25 = vector.load %arg8[%c0_19, %c0_20] : memref<256x256xbf16, #tpu.memory_space<vmem>>, vector<256x256xbf16>
      tpu.vector_store %arg8[%c0_19, %c0_20], %24 {strides = array<i32>} : memref<256x256xbf16, #tpu.memory_space<vmem>>, vector<256x256xbf16>,
    } else {
    }
    return
  }
  func.func @transform_0(%arg0: i32, %arg1: i32, %arg2: i32) -> (i32, i32) {
    %c0_i32 = arith.constant 0 : i32
    return %arg0, %arg2 : i32, i32
  }
  func.func @transform_1(%arg0: i32, %arg1: i32, %arg2: i32) -> (i32, i32) {
    %c0_i32 = arith.constant 0 : i32
    %c0_i32_0 = arith.constant 0 : i32
    return %arg2, %c0_i32 : i32, i32
  }
  func.func @transform_2(%arg0: i32, %arg1: i32, %arg2: i32) -> (i32, i32) {
    %c0_i32 = arith.constant 0 : i32
    %c0_i32_0 = arith.constant 0 : i32
    return %c0_i32, %arg1 : i32, i32
  }
  func.func @transform_3(%arg0: i32, %arg1: i32, %arg2: i32) -> (i32, i32) {
    %c0_i32 = arith.constant 0 : i32
    %c0_i32_0 = arith.constant 0 : i32
    return %c0_i32, %arg1 : i32, i32
  }
  func.func @transform_4(%arg0: i32, %arg1: i32, %arg2: i32) -> (i32, i32) {
    %c0_i32 = arith.constant 0 : i32
    %c0_i32_0 = arith.constant 0 : i32
    return %c0_i32, %arg1 : i32, i32
  }
  func.func @transform_5(%arg0: i32, %arg1: i32, %arg2: i32) -> (i32, i32) {
    %c0_i32 = arith.constant 0 : i32
    return %arg0, %arg1 : i32, i32
  }
}

</mosaic_0001>

<llo_original>
// kernel: tpu_custom_call.1
$region0: #{tpu_custom_call.1}
  #allocation0 [shape = 'u32[]', space=smem, size = 0x4, offset = 0x4, fixed_abs, tag = 'smem constant byte address 0x4 - core index']
  #allocation1 [shape = 'u32[144,128]{1,0:T(1,128)}', space=vmem, size = 0x12000, scoped, tag = 'internal scratch']
  #allocation2 [shape = 'f32[256,256]{1,0:T(8,128)}', space=vmem, size = 0x40000, scoped, tag = 'scratch operand']
  %s0 = inlined_call_operand.hbm [shape: bf16[768,768], index: 0, kind: input, shape index: {}]
  %s1 = inlined_call_operand.hbm [shape: bf16[768,128], index: 1, kind: input, shape index: {}]
  %s2 = inlined_call_operand.hbm [shape: bf16[128,256], index: 2, kind: input, shape index: {}]
  %s3 = inlined_call_operand.hbm [shape: f32[1,256], index: 3, kind: input, shape index: {}]
  %s4 = inlined_call_operand.hbm [shape: f32[1,256], index: 4, kind: input, shape index: {}]
  %s5 = inlined_call_operand.hbm [shape: bf16[768,256], index: 5, kind: output, shape index: {}]
  %s6 = sld [smem:[#allocation0]]
  $region81: #{tpu_custom_call.1} parent=0
    _
  %s8 = ssub.s32 1, %s6
  %s9 = scalar_select 0, %s8, %s6
  $region1: #{tpu_custom_call.1} parent=0
    #allocation3 [shape = 'u8[262144]{0}', space=vmem, size = 0x40000, scoped, tag = 'input window, operand 0']
    #allocation4 [shape = 's32[2]{0}', space=sflag, size = 0x8, scoped, tag = 'scoped memory for tpu_custom_call.1']
    #allocation5 [shape = 's32[2]{0}', space=sflag, size = 0x8, scoped, tag = 'scoped memory for tpu_custom_call.1']
    #allocation6 [shape = 'u8[131072]{0}', space=vmem, size = 0x20000, scoped, tag = 'input window, operand 1']
    #allocation7 [shape = 's32[2]{0}', space=sflag, size = 0x8, scoped, tag = 'scoped memory for tpu_custom_call.1']
    #allocation8 [shape = 'u8[65536]{0}', space=vmem, size = 0x10000, scoped, tag = 'input window, operand 2, single buffered']
    #allocation9 [shape = 'u8[1024]{0}', space=vmem, size = 0x400, scoped, tag = 'input window, operand 3, single buffered']
    #allocation10 [shape = 's32[1]{0}', space=sflag, size = 0x4, scoped, tag = 'scoped memory for tpu_custom_call.1']
    #allocation11 [shape = 'u8[1024]{0}', space=vmem, size = 0x400, scoped, tag = 'input window, operand 4, single buffered']
    #allocation12 [shape = 'u8[262144]{0}', space=vmem, size = 0x40000, scoped, tag = 'output window, operand 0']
    %10 = vsyncpa [#allocation4], 0
    %s11 = scalar_lea.sflag [#allocation4], 1
    %12 = vsyncpa %s11, 0
    %13 = vsyncpa [#allocation7], 0
    %s14 = scalar_lea.sflag [#allocation7], 1
    %15 = vsyncpa %s14, 0
    %16 = vsyncpa [#allocation10], 0
    %17 = vsyncpa [#allocation5], 0
    %s18 = scalar_lea.sflag [#allocation5], 1
    %19 = vsyncpa %s18, 0
    loop: start=0, step=1, limit=11
    $region2: #{tpu_custom_call.1} parent=1 // loop_pre_header
      _
    $region3: #{tpu_custom_call.1} parent=1 // loop_header
      %s21 = sphi 0, %s25
      %p22 = scmp.ge.s32.totalorder %s21, 11
      %s28 = sphi 0, %s47
      %s29 = sphi 0, %s43
      %s30 = sphi 0, %s39
      %s31 = sphi 0, %s28
      %s32 = sphi 0, %s29
      %s33 = sphi 0, %s30
      %s34 = sphi 0, %s31
      %s35 = sphi 0, %s32
      %s36 = sphi 0, %s33
      %s52 = sphi 0, %s54
      %s55 = sphi 0, %s52
      %s56 = sphi 0, %s55
      %s72 = sphi 0, %s56
      %s78 = sphi 0, %s80
      %s81 = sphi 0, %s78
      %s82 = sphi 0, %s81
      %s98 = sphi 0, %s82
      %s104 = sphi 0, %s106
      %s107 = sphi 0, %s104
      %s108 = sphi 0, %s107
      %s124 = sphi 0, %s108
      %s130 = sphi 0, %s132
      %s133 = sphi 0, %s130
      %s134 = sphi 0, %s133
      %s150 = sphi 0, %s134
      %s156 = sphi 0, %s158
      %s159 = sphi 0, %s156
      %s160 = sphi 0, %s159
      %s176 = sphi 0, %s160
      %s184 = sphi 0, %s186
      %s187 = sphi 0, %s184
      %s188 = sphi 0, %s187
      %s204 = sphi 0, %s188
    $region4: #{tpu_custom_call.1} parent=1 // loop_header_branch
      %24 = sbr.rel (%p22) target = $region8
    $region5: #{tpu_custom_call.1} parent=1 // loop_body
      %s26 = ssub.s32 %s21, 1
      %s27 = ssub.s32 %s21, 2
      %s37 = sadd.s32 1, %s30
      %p38 = scmp.ge.s32.totalorder %s37, 3
      %s39 = scalar_select %p38, 0, %s37
      %s40 = sadd.s32 1, %s29
      %s41 = scalar_select %p38, %s40, %s29
      %p42 = scmp.ge.s32.totalorder %s41, 1
      %s43 = scalar_select %p42, 0, %s41
      %s44 = sadd.s32 1, %s28
      %s45 = scalar_select %p42, %s44, %s28
      %p46 = scmp.ge.s32.totalorder %s45, 3
      %s47 = scalar_select %p46, 0, %s45
      %s48 = ssub.s32 %s28, %s47
      %s49 = ssub.s32 %s30, %s39
      %s50 = sor.u32 %s48, %s49
      %p51 = scmp.eq.s32.totalorder %s50, 0
      %s53 = sadd.s32 %s52, 1
      %s54 = scalar_select %p51, %s52, %s53
      %p57 = pneg %p51
      %p58 = scmp.eq.s32.totalorder %s21, 8
      %p59 = por %p57, %p58
      %p60 = scmp.ne.s32.totalorder %s52, %s55
      %p61 = scmp.eq.s32.totalorder %s21, 0
      %p62 = por %p60, %p61
      %p63 = scmp.ne.s32.totalorder %s52, %s55
      %p64 = scmp.eq.s32.totalorder %s26, 8
      %p65 = por %p63, %p64
      %p66 = scmp.ne.s32.totalorder %s55, %s56
      %p67 = scmp.eq.s32.totalorder %s26, 0
      %p68 = por %p66, %p67
      %p69 = scmp.ne.s32.totalorder %s55, %s56
      %p70 = scmp.eq.s32.totalorder %s27, 8
      %p71 = por %p69, %p70
      %p73 = scmp.ne.s32.totalorder %s56, %s72
      %p74 = scmp.eq.s32.totalorder %s27, 0
      %p75 = por %p73, %p74
      %s76 = ssub.s32 %s30, %s39
      %p77 = scmp.eq.s32.totalorder %s76, 0
      %s79 = sadd.s32 %s78, 1
      %s80 = scalar_select %p77, %s78, %s79
      %p83 = pneg %p77
      %p84 = scmp.eq.s32.totalorder %s21, 8
      %p85 = por %p83, %p84
      %p86 = scmp.ne.s32.totalorder %s78, %s81
      %p87 = scmp.eq.s32.totalorder %s21, 0
      %p88 = por %p86, %p87
      %p89 = scmp.ne.s32.totalorder %s78, %s81
      %p90 = scmp.eq.s32.totalorder %s26, 8
      %p91 = por %p89, %p90
      %p92 = scmp.ne.s32.totalorder %s81, %s82
      %p93 = scmp.eq.s32.totalorder %s26, 0
      %p94 = por %p92, %p93
      %p95 = scmp.ne.s32.totalorder %s81, %s82
      %p96 = scmp.eq.s32.totalorder %s27, 8
      %p97 = por %p95, %p96
      %p99 = scmp.ne.s32.totalorder %s82, %s98
      %p100 = scmp.eq.s32.totalorder %s27, 0
      %p101 = por %p99, %p100
      %s102 = ssub.s32 %s29, %s43
      %p103 = scmp.eq.s32.totalorder %s102, 0
      %s105 = sadd.s32 %s104, 1
      %s106 = scalar_select %p103, %s104, %s105
      %p109 = pneg %p103
      %p110 = scmp.eq.s32.totalorder %s21, 8
      %p111 = por %p109, %p110
      %p112 = scmp.ne.s32.totalorder %s104, %s107
      %p113 = scmp.eq.s32.totalorder %s21, 0
      %p114 = por %p112, %p113
      %p115 = scmp.ne.s32.totalorder %s104, %s107
      %p116 = scmp.eq.s32.totalorder %s26, 8
      %p117 = por %p115, %p116
      %p118 = scmp.ne.s32.totalorder %s107, %s108
      %p119 = scmp.eq.s32.totalorder %s26, 0
      %p120 = por %p118, %p119
      %p121 = scmp.ne.s32.totalorder %s107, %s108
      %p122 = scmp.eq.s32.totalorder %s27, 8
      %p123 = por %p121, %p122
      %p125 = scmp.ne.s32.totalorder %s108, %s124
      %p126 = scmp.eq.s32.totalorder %s27, 0
      %p127 = por %p125, %p126
      %s128 = ssub.s32 %s29, %s43
      %p129 = scmp.eq.s32.totalorder %s128, 0
      %s131 = sadd.s32 %s130, 1
      %s132 = scalar_select %p129, %s130, %s131
      %p135 = pneg %p129
      %p136 = scmp.eq.s32.totalorder %s21, 8
      %p137 = por %p135, %p136
      %p138 = scmp.ne.s32.totalorder %s130, %s133
      %p139 = scmp.eq.s32.totalorder %s21, 0
      %p140 = por %p138, %p139
      %p141 = scmp.ne.s32.totalorder %s130, %s133
      %p142 = scmp.eq.s32.totalorder %s26, 8
      %p143 = por %p141, %p142
      %p144 = scmp.ne.s32.totalorder %s133, %s134
      %p145 = scmp.eq.s32.totalorder %s26, 0
      %p146 = por %p144, %p145
      %p147 = scmp.ne.s32.totalorder %s133, %s134
      %p148 = scmp.eq.s32.totalorder %s27, 8
      %p149 = por %p147, %p148
      %p151 = scmp.ne.s32.totalorder %s134, %s150
      %p152 = scmp.eq.s32.totalorder %s27, 0
      %p153 = por %p151, %p152
      %s154 = ssub.s32 %s29, %s43
      %p155 = scmp.eq.s32.totalorder %s154, 0
      %s157 = sadd.s32 %s156, 1
      %s158 = scalar_select %p155, %s156, %s157
      %p161 = pneg %p155
      %p162 = scmp.eq.s32.totalorder %s21, 8
      %p163 = por %p161, %p162
      %p164 = scmp.ne.s32.totalorder %s156, %s159
      %p165 = scmp.eq.s32.totalorder %s21, 0
      %p166 = por %p164, %p165
      %p167 = scmp.ne.s32.totalorder %s156, %s159
      %p168 = scmp.eq.s32.totalorder %s26, 8
      %p169 = por %p167, %p168
      %p170 = scmp.ne.s32.totalorder %s159, %s160
      %p171 = scmp.eq.s32.totalorder %s26, 0
      %p172 = por %p170, %p171
      %p173 = scmp.ne.s32.totalorder %s159, %s160
      %p174 = scmp.eq.s32.totalorder %s27, 8
      %p175 = por %p173, %p174
      %p177 = scmp.ne.s32.totalorder %s160, %s176
      %p178 = scmp.eq.s32.totalorder %s27, 0
      %p179 = por %p177, %p178
      %s180 = ssub.s32 %s28, %s47
      %s181 = ssub.s32 %s29, %s43
      %s182 = sor.u32 %s180, %s181
      %p183 = scmp.eq.s32.totalorder %s182, 0
      %s185 = sadd.s32 %s184, 1
      %s186 = scalar_select %p183, %s184, %s185
      %p189 = pneg %p183
      %p190 = scmp.eq.s32.totalorder %s21, 8
      %p191 = por %p189, %p190
      %p192 = scmp.ne.s32.totalorder %s184, %s187
      %p193 = scmp.eq.s32.totalorder %s21, 0
      %p194 = por %p192, %p193
      %p195 = scmp.ne.s32.totalorder %s184, %s187
      %p196 = scmp.eq.s32.totalorder %s26, 8
      %p197 = por %p195, %p196
      %p198 = scmp.ne.s32.totalorder %s187, %s188
      %p199 = scmp.eq.s32.totalorder %s26, 0
      %p200 = por %p198, %p199
      %p201 = scmp.ne.s32.totalorder %s187, %s188
      %p202 = scmp.eq.s32.totalorder %s27, 8
      %p203 = por %p201, %p202
      %p205 = scmp.ne.s32.totalorder %s188, %s204
      %p206 = scmp.eq.s32.totalorder %s27, 0
      %p207 = por %p205, %p206
      %p208 = scmp.le.s32.totalorder 1, %s21
      %p209 = scmp.lt.s32.totalorder %s21, 10
      %p210 = pnand %p208, %p209
      %p211 = pneg %p210
      // Predicated region
      $region9: #{tpu_custom_call.1} parent=5 // pred_check
        _
      $region10: #{tpu_custom_call.1} parent=5 // pred_check_branch
        %213 = sbr.rel (%p210) target = $region12
      $region11: #{tpu_custom_call.1} parent=5 // pred_region
        %s214 = ssub.s32 %s21, 1
        // Predicated region
        $region13: #{tpu_custom_call.1} parent=11 // pred_check
          %p215 = pneg %p120
        $region14: #{tpu_custom_call.1} parent=11 // pred_check_branch
          %217 = sbr.rel (%p215) target = $region16
        $region15: #{tpu_custom_call.1} parent=11 // pred_region
          %s218 = smul.u32 2, %s32
          %s220 = ssub.s32 2048, 2048
          %221 = vsyncadd [#allocation7], %s220
          %s222 = smul.addr %s218, 64
          %s223 = scalar_lea.hbm %s2, %s222
          %s224 = sshll.u32 [#allocation8], 4
          %s225 = int_to_ptr.vmem [resolvable:$true] %s224
          %230 = dma.hbm_to_vmem [thread:$0]  %s223, 2048, %s225, [#allocation7], 128, 128, 8
        $region16: #{tpu_custom_call.1} parent=11 // pred_fallthru
          _
        // Predicated region
        $region17: #{tpu_custom_call.1} parent=11 // pred_check
          %p231 = pneg %p146
        $region18: #{tpu_custom_call.1} parent=11 // pred_check_branch
          %233 = sbr.rel (%p231) target = $region20
        $region19: #{tpu_custom_call.1} parent=11 // pred_region
          %s234 = smul.u32 2, %s32
          %s236 = ssub.s32 32, 32
          %237 = vsyncadd [#allocation10], %s236
          %s238 = smul.addr %s234, 16
          %s239 = scalar_lea.hbm %s3, %s238
          %s241 = sshll.u32 [#allocation9], 4
          %s242 = int_to_ptr.vmem [resolvable:$true] %s241
          %244 = dma.hbm_to_vmem [thread:$0]  %s239, 32, %s242, [#allocation10]
        $region20: #{tpu_custom_call.1} parent=11 // pred_fallthru
          _
        // Predicated region
        $region21: #{tpu_custom_call.1} parent=11 // pred_check
          %p245 = pneg %p172
        $region22: #{tpu_custom_call.1} parent=11 // pred_check_branch
          %247 = sbr.rel (%p245) target = $region24
        $region23: #{tpu_custom_call.1} parent=11 // pred_region
          %s248 = smul.u32 2, %s32
          %s250 = ssub.s32 32, 32
          %251 = vsyncadd [#allocation10], %s250
          %s252 = smul.addr %s248, 16
          %s253 = scalar_lea.hbm %s4, %s252
          %s255 = sshll.u32 [#allocation11], 4
          %s256 = int_to_ptr.vmem [resolvable:$true] %s255
          %258 = dma.hbm_to_vmem [thread:$0]  %s253, 32, %s256, [#allocation10]
        $region24: #{tpu_custom_call.1} parent=11 // pred_fallthru
          _
      $region12: #{tpu_custom_call.1} parent=5 // pred_fallthru
        _
      %p259 = scmp.lt.s32.totalorder %s21, 9
      // Predicated region
      $region25: #{tpu_custom_call.1} parent=5 // pred_check
        %p260 = pneg %p259
      $region26: #{tpu_custom_call.1} parent=5 // pred_check_branch
        %262 = sbr.rel (%p260) target = $region28
      $region27: #{tpu_custom_call.1} parent=5 // pred_region
        // Predicated region
        $region29: #{tpu_custom_call.1} parent=27 // pred_check
          %p263 = pneg %p62
        $region30: #{tpu_custom_call.1} parent=27 // pred_check_branch
          %265 = sbr.rel (%p263) target = $region32
        $region31: #{tpu_custom_call.1} parent=27 // pred_region
          %s266 = sand.u32 %s52, 1
          %s267 = scalar_lea.sflag [#allocation4], %s266
          %s268 = sand.u32 %s52, 1
          %s269 = smul.addr %s268, 256
          %s270 = scalar_lea.vmem [#allocation3], %s269
          %s271 = smul.u32 32, %s28
          %s272 = smul.u32 2, %s30
          %s274 = ssub.s32 4096, 4096
          %275 = vsyncadd %s267, %s274
          %s276 = smul.addr %s271, 6
          %s277 = sadd.s32 %s272, %s276
          %s278 = smul.addr %s277, 64
          %s279 = scalar_lea.hbm %s0, %s278
          %s280 = sshll.u32 %s270, 4
          %s281 = int_to_ptr.vmem [resolvable:$true] %s280
          %286 = dma.hbm_to_vmem [thread:$0]  %s279, 4096, %s281, %s267, 384, 128, 8
        $region32: #{tpu_custom_call.1} parent=27 // pred_fallthru
          _
        // Predicated region
        $region33: #{tpu_custom_call.1} parent=27 // pred_check
          %p287 = pneg %p88
        $region34: #{tpu_custom_call.1} parent=27 // pred_check_branch
          %289 = sbr.rel (%p287) target = $region36
        $region35: #{tpu_custom_call.1} parent=27 // pred_region
          %s290 = sand.u32 %s21, 1
          %s291 = scalar_lea.sflag [#allocation7], %s290
          %s292 = sand.u32 %s78, 1
          %s293 = smul.addr %s292, 128
          %s294 = scalar_lea.vmem [#allocation6], %s293
          %s295 = smul.u32 32, %s30
          %s297 = ssub.s32 2048, 2048
          %298 = vsyncadd %s291, %s297
          %s299 = smul.addr %s295, 64
          %s300 = scalar_lea.hbm %s1, %s299
          %s301 = sshll.u32 %s294, 4
          %s302 = int_to_ptr.vmem [resolvable:$true] %s301
          %307 = dma.hbm_to_vmem [thread:$0]  %s300, 2048, %s302, %s291, 64, 64, 4
        $region36: #{tpu_custom_call.1} parent=27 // pred_fallthru
          _
      $region28: #{tpu_custom_call.1} parent=5 // pred_fallthru
        _
      %p308 = scmp.le.s32.totalorder 1, %s21
      %p309 = scmp.lt.s32.totalorder %s21, 10
      %p310 = pnand %p308, %p309
      %p311 = pneg %p310
      // Predicated region
      $region37: #{tpu_custom_call.1} parent=5 // pred_check
        _
      $region38: #{tpu_custom_call.1} parent=5 // pred_check_branch
        %313 = sbr.rel (%p310) target = $region40
      $region39: #{tpu_custom_call.1} parent=5 // pred_region
        %s314 = ssub.s32 %s21, 1
        %s315 = sand.u32 %s55, 1
        %s316 = scalar_lea.sflag [#allocation4], %s315
        %s317 = sand.u32 %s55, 1
        %s318 = smul.addr %s317, 256
        %s319 = scalar_lea.vmem [#allocation3], %s318
        // Predicated region
        $region41: #{tpu_custom_call.1} parent=39 // pred_check
          %p320 = pneg %p68
        $region42: #{tpu_custom_call.1} parent=39 // pred_check_branch
          %322 = sbr.rel (%p320) target = $region44
        $region43: #{tpu_custom_call.1} parent=39 // pred_region
          %323 = dma.done %s316, 4096
        $region44: #{tpu_custom_call.1} parent=39 // pred_fallthru
          _
        %s324 = sand.u32 %s26, 1
        %s325 = scalar_lea.sflag [#allocation7], %s324
        %s326 = sand.u32 %s81, 1
        %s327 = smul.addr %s326, 128
        %s328 = scalar_lea.vmem [#allocation6], %s327
        // Predicated region
        $region45: #{tpu_custom_call.1} parent=39 // pred_check
          %p329 = pneg %p94
        $region46: #{tpu_custom_call.1} parent=39 // pred_check_branch
          %331 = sbr.rel (%p329) target = $region48
        $region47: #{tpu_custom_call.1} parent=39 // pred_region
          %332 = dma.done %s325, 2048
        $region48: #{tpu_custom_call.1} parent=39 // pred_fallthru
          _
        // Predicated region
        $region49: #{tpu_custom_call.1} parent=39 // pred_check
          %p333 = pneg %p120
        $region50: #{tpu_custom_call.1} parent=39 // pred_check_branch
          %335 = sbr.rel (%p333) target = $region52
        $region51: #{tpu_custom_call.1} parent=39 // pred_region
          %336 = dma.done [#allocation7], 2048
        $region52: #{tpu_custom_call.1} parent=39 // pred_fallthru
          _
        // Predicated region
        $region53: #{tpu_custom_call.1} parent=39 // pred_check
          %p337 = pneg %p146
        $region54: #{tpu_custom_call.1} parent=39 // pred_check_branch
          %339 = sbr.rel (%p337) target = $region56
        $region55: #{tpu_custom_call.1} parent=39 // pred_region
          %340 = dma.done [#allocation10], 32
        $region56: #{tpu_custom_call.1} parent=39 // pred_fallthru
          _
        // Predicated region
        $region57: #{tpu_custom_call.1} parent=39 // pred_check
          %p341 = pneg %p172
        $region58: #{tpu_custom_call.1} parent=39 // pred_check_branch
          %343 = sbr.rel (%p341) target = $region60
        $region59: #{tpu_custom_call.1} parent=39 // pred_region
          %344 = dma.done [#allocation10], 32
        $region60: #{tpu_custom_call.1} parent=39 // pred_fallthru
          _
        %s345 = sand.u32 %s55, 1
        %s346 = scalar_lea.sflag [#allocation4], %s345
        %s347 = sand.u32 %s55, 1
        %s348 = smul.addr %s347, 256
        %s349 = scalar_lea.vmem [#allocation3], %s348
        %p350 = pneg %p68
        %p351 = pneg %p65
        %s352 = sand.u32 %s26, 1
        %s353 = scalar_lea.sflag [#allocation7], %s352
        %s354 = sand.u32 %s81, 1
        %s355 = smul.addr %s354, 128
        %s356 = scalar_lea.vmem [#allocation6], %s355
        %p357 = pneg %p94
        %p358 = pneg %p91
        %p359 = pneg %p120
        %p360 = pneg %p117
        %p361 = pneg %p146
        %p362 = pneg %p143
        %p363 = pneg %p172
        %p364 = pneg %p169
        %p365 = pneg %p200
        %p366 = pneg %p197
        %s367 = sand.u32 %s187, 1
        %s368 = scalar_lea.sflag [#allocation5], %s367
        %s369 = sand.u32 %s187, 1
        %s370 = smul.addr %s369, 256
        %s371 = scalar_lea.vmem [#allocation12], %s370
        %s372 = smul.u32 32, %s31
        %s373 = smul.u32 2, %s33
        %s374 = smul.u32 32, %s33
        %s375 = smul.u32 2, %s32
        %s376 = smul.u32 2, %s32
        %s377 = smul.u32 2, %s32
        %s378 = smul.u32 32, %s31
        %s379 = smul.u32 2, %s32
        %p381 = scmp.eq.s32.totalorder %s33, 0
        // Predicated region
        $region61: #{tpu_custom_call.1} parent=39 // pred_check
          %p382 = pneg %p381
        $region62: #{tpu_custom_call.1} parent=39 // pred_check_branch
          %384 = sbr.rel (%p382) target = $region64
        $region63: #{tpu_custom_call.1} parent=39 // pred_region
          %385 = vst [vmem:[#allocation2] sm:$0xff] 0.0
          %386 = vst [vmem:[#allocation2 + $0x8] sm:$0xff] 0.0
          %387 = vst [vmem:[#allocation2 + $0x10] sm:$0xff] 0.0
          %388 = vst [vmem:[#allocation2 + $0x18] sm:$0xff] 0.0
          %389 = vst [vmem:[#allocation2 + $0x20] sm:$0xff] 0.0
          %390 = vst [vmem:[#allocation2 + $0x28] sm:$0xff] 0.0
          %391 = vst [vmem:[#allocation2 + $0x30] sm:$0xff] 0.0
          %392 = vst [vmem:[#allocation2 + $0x38] sm:$0xff] 0.0
          %393 = vst [vmem:[#allocation2 + $0x40] sm:$0xff] 0.0
          %394 = vst [vmem:[#allocation2 + $0x48] sm:$0xff] 0.0
          %395 = vst [vmem:[#allocation2 + $0x50] sm:$0xff] 0.0
          %396 = vst [vmem:[#allocation2 + $0x58] sm:$0xff] 0.0
          %397 = vst [vmem:[#allocation2 + $0x60] sm:$0xff] 0.0
          %398 = vst [vmem:[#allocation2 + $0x68] sm:$0xff] 0.0
          %399 = vst [vmem:[#allocation2 + $0x70] sm:$0xff] 0.0
          %400 = vst [vmem:[#allocation2 + $0x78] sm:$0xff] 0.0
          %401 = vst [vmem:[#allocation2 + $0x80] sm:$0xff] 0.0
          %402 = vst [vmem:[#allocation2 + $0x88] sm:$0xff] 0.0
          %403 = vst [vmem:[#allocation2 + $0x90] sm:$0xff] 0.0
          %404 = vst [vmem:[#allocation2 + $0x98] sm:$0xff] 0.0
          %405 = vst [vmem:[#allocation2 + $0xa0] sm:$0xff] 0.0
          %406 = vst [vmem:[#allocation2 + $0xa8] sm:$0xff] 0.0
          %407 = vst [vmem:[#allocation2 + $0xb0] sm:$0xff] 0.0
          %408 = vst [vmem:[#allocation2 + $0xb8] sm:$0xff] 0.0
          %409 = vst [vmem:[#allocation2 + $0xc0] sm:$0xff] 0.0
          %410 = vst [vmem:[#allocation2 + $0xc8] sm:$0xff] 0.0
          %411 = vst [vmem:[#allocation2 + $0xd0] sm:$0xff] 0.0
          %412 = vst [vmem:[#allocation2 + $0xd8] sm:$0xff] 0.0
          %413 = vst [vmem:[#allocation2 + $0xe0] sm:$0xff] 0.0
          %414 = vst [vmem:[#allocation2 + $0xe8] sm:$0xff] 0.0
          %415 = vst [vmem:[#allocation2 + $0xf0] sm:$0xff] 0.0
          %416 = vst [vmem:[#allocation2 + $0xf8] sm:$0xff] 0.0
          %417 = vst [vmem:[#allocation2 + $0x100] sm:$0xff] 0.0
          %418 = vst [vmem:[#allocation2 + $0x108] sm:$0xff] 0.0
          %419 = vst [vmem:[#allocation2 + $0x110] sm:$0xff] 0.0
          %420 = vst [vmem:[#allocation2 + $0x118] sm:$0xff] 0.0
          %421 = vst [vmem:[#allocation2 + $0x120] sm:$0xff] 0.0
          %422 = vst [vmem:[#allocation2 + $0x128] sm:$0xff] 0.0
          %423 = vst [vmem:[#allocation2 + $0x130] sm:$0xff] 0.0
          %424 = vst [vmem:[#allocation2 + $0x138] sm:$0xff] 0.0
          %425 = vst [vmem:[#allocation2 + $0x140] sm:$0xff] 0.0
          %426 = vst [vmem:[#allocation2 + $0x148] sm:$0xff] 0.0
          %427 = vst [vmem:[#allocation2 + $0x150] sm:$0xff] 0.0
          %428 = vst [vmem:[#allocation2 + $0x158] sm:$0xff] 0.0
          %429 = vst [vmem:[#allocation2 + $0x160] sm:$0xff] 0.0
          %430 = vst [vmem:[#allocation2 + $0x168] sm:$0xff] 0.0
          %431 = vst [vmem:[#allocation2 + $0x170] sm:$0xff] 0.0
          %432 = vst [vmem:[#allocation2 + $0x178] sm:$0xff] 0.0
          %433 = vst [vmem:[#allocation2 + $0x180] sm:$0xff] 0.0
          %434 = vst [vmem:[#allocation2 + $0x188] sm:$0xff] 0.0
          %435 = vst [vmem:[#allocation2 + $0x190] sm:$0xff] 0.0
          %436 = vst [vmem:[#allocation2 + $0x198] sm:$0xff] 0.0
          %437 = vst [vmem:[#allocation2 + $0x1a0] sm:$0xff] 0.0
          %438 = vst [vmem:[#allocation2 + $0x1a8] sm:$0xff] 0.0
          %439 = vst [vmem:[#allocation2 + $0x1b0] sm:$0xff] 0.0
          %440 = vst [vmem:[#allocation2 + $0x1b8] sm:$0xff] 0.0
          %441 = vst [vmem:[#allocation2 + $0x1c0] sm:$0xff] 0.0
          %442 = vst [vmem:[#allocation2 + $0x1c8] sm:$0xff] 0.0
          %443 = vst [vmem:[#allocation2 + $0x1d0] sm:$0xff] 0.0
          %444 = vst [vmem:[#allocation2 + $0x1d8] sm:$0xff] 0.0
          %445 = vst [vmem:[#allocation2 + $0x1e0] sm:$0xff] 0.0
          %446 = vst [vmem:[#allocation2 + $0x1e8] sm:$0xff] 0.0
          %447 = vst [vmem:[#allocation2 + $0x1f0] sm:$0xff] 0.0
          %448 = vst [vmem:[#allocation2 + $0x1f8] sm:$0xff] 0.0
        $region64: #{tpu_custom_call.1} parent=39 // pred_fallthru
          _
        %v449 = vld [vmem:[%s328] sm:$0xf]
        %v450 = vld [vmem:[%s328 + $0x4] sm:$0xf]
        %v451 = vld [vmem:[%s328 + $0x8] sm:$0xf]
        %v452 = vld [vmem:[%s328 + $0xc] sm:$0xf]
        %v453 = vld [vmem:[%s328 + $0x10] sm:$0xf]
        %v454 = vld [vmem:[%s328 + $0x14] sm:$0xf]
        %v455 = vld [vmem:[%s328 + $0x18] sm:$0xf]
        %v456 = vld [vmem:[%s328 + $0x1c] sm:$0xf]
        %v457 = vld [vmem:[%s328 + $0x20] sm:$0xf]
        %v458 = vld [vmem:[%s328 + $0x24] sm:$0xf]
        %v459 = vld [vmem:[%s328 + $0x28] sm:$0xf]
        %v460 = vld [vmem:[%s328 + $0x2c] sm:$0xf]
        %v461 = vld [vmem:[%s328 + $0x30] sm:$0xf]
        %v462 = vld [vmem:[%s328 + $0x34] sm:$0xf]
        %v463 = vld [vmem:[%s328 + $0x38] sm:$0xf]
        %v464 = vld [vmem:[%s328 + $0x3c] sm:$0xf]
        %v465 = vld [vmem:[%s328 + $0x40] sm:$0xf]
        %v466 = vld [vmem:[%s328 + $0x44] sm:$0xf]
        %v467 = vld [vmem:[%s328 + $0x48] sm:$0xf]
        %v468 = vld [vmem:[%s328 + $0x4c] sm:$0xf]
        %v469 = vld [vmem:[%s328 + $0x50] sm:$0xf]
        %v470 = vld [vmem:[%s328 + $0x54] sm:$0xf]
        %v471 = vld [vmem:[%s328 + $0x58] sm:$0xf]
        %v472 = vld [vmem:[%s328 + $0x5c] sm:$0xf]
        %v473 = vld [vmem:[%s328 + $0x60] sm:$0xf]
        %v474 = vld [vmem:[%s328 + $0x64] sm:$0xf]
        %v475 = vld [vmem:[%s328 + $0x68] sm:$0xf]
        %v476 = vld [vmem:[%s328 + $0x6c] sm:$0xf]
        %v477 = vld [vmem:[%s328 + $0x70] sm:$0xf]
        %v478 = vld [vmem:[%s328 + $0x74] sm:$0xf]
        %v479 = vld [vmem:[%s328 + $0x78] sm:$0xf]
        %v480 = vld [vmem:[%s328 + $0x7c] sm:$0xf]
        %v481 = vld [vmem:[#allocation8] sm:$0xff]
        %v482 = vld [vmem:[#allocation8 + $0x8] sm:$0xff]
        %v483 = vld [vmem:[#allocation8 + $0x10] sm:$0xff]
        %v484 = vld [vmem:[#allocation8 + $0x18] sm:$0xff]
        %v485 = vld [vmem:[#allocation8 + $0x20] sm:$0xff]
        %v486 = vld [vmem:[#allocation8 + $0x28] sm:$0xff]
        %v487 = vld [vmem:[#allocation8 + $0x30] sm:$0xff]
        %v488 = vld [vmem:[#allocation8 + $0x38] sm:$0xff]
        %v489 = vld [vmem:[#allocation8 + $0x40] sm:$0xff]
        %v490 = vld [vmem:[#allocation8 + $0x48] sm:$0xff]
        %v491 = vld [vmem:[#allocation8 + $0x50] sm:$0xff]
        %v492 = vld [vmem:[#allocation8 + $0x58] sm:$0xff]
        %v493 = vld [vmem:[#allocation8 + $0x60] sm:$0xff]
        %v494 = vld [vmem:[#allocation8 + $0x68] sm:$0xff]
        %v495 = vld [vmem:[#allocation8 + $0x70] sm:$0xff]
        %v496 = vld [vmem:[#allocation8 + $0x78] sm:$0xff]
        %v529 = vunpack.c.l.b16 %v449
        %v530 = vunpack.c.l.b16 %v450
        %v531 = vunpack.c.l.b16 %v451
        %v532 = vunpack.c.l.b16 %v452
        %v533 = vunpack.c.l.b16 %v453
        %v534 = vunpack.c.l.b16 %v454
        %v535 = vunpack.c.l.b16 %v455
        %v536 = vunpack.c.l.b16 %v456
        %v537 = vunpack.c.l.b16 %v457
        %v538 = vunpack.c.l.b16 %v458
        %v539 = vunpack.c.l.b16 %v459
        %v540 = vunpack.c.l.b16 %v460
        %v541 = vunpack.c.l.b16 %v461
        %v542 = vunpack.c.l.b16 %v462
        %v543 = vunpack.c.l.b16 %v463
        %v544 = vunpack.c.l.b16 %v464
        %v545 = vunpack.c.l.b16 %v465
        %v546 = vunpack.c.l.b16 %v466
        %v547 = vunpack.c.l.b16 %v467
        %v548 = vunpack.c.l.b16 %v468
        %v549 = vunpack.c.l.b16 %v469
        %v550 = vunpack.c.l.b16 %v470
        %v551 = vunpack.c.l.b16 %v471
        %v552 = vunpack.c.l.b16 %v472
        %v553 = vunpack.c.l.b16 %v473
        %v554 = vunpack.c.l.b16 %v474
        %v555 = vunpack.c.l.b16 %v475
        %v556 = vunpack.c.l.b16 %v476
        %v557 = vunpack.c.l.b16 %v477
        %v558 = vunpack.c.l.b16 %v478
        %v559 = vunpack.c.l.b16 %v479
        %v560 = vunpack.c.l.b16 %v480
        %v561 = vpack.c.b16 %v530, %v529
        %v562 = vpack.c.b16 %v532, %v531
        %v563 = vpack.c.b16 %v534, %v533
        %v564 = vpack.c.b16 %v536, %v535
        %v565 = vpack.c.b16 %v538, %v537
        %v566 = vpack.c.b16 %v540, %v539
        %v567 = vpack.c.b16 %v542, %v541
        %v568 = vpack.c.b16 %v544, %v543
        %v569 = vpack.c.b16 %v546, %v545
        %v570 = vpack.c.b16 %v548, %v547
        %v571 = vpack.c.b16 %v550, %v549
        %v572 = vpack.c.b16 %v552, %v551
        %v573 = vpack.c.b16 %v554, %v553
        %v574 = vpack.c.b16 %v556, %v555
        %v575 = vpack.c.b16 %v558, %v557
        %v576 = vpack.c.b16 %v560, %v559
        %v609 = vunpack.c.l.b16 %v481
        %v610 = vunpack.c.h.b16 %v481
        %v611 = vunpack.c.l.b16 %v482
        %v612 = vunpack.c.h.b16 %v482
        %v613 = vunpack.c.l.b16 %v483
        %v614 = vunpack.c.h.b16 %v483
        %v615 = vunpack.c.l.b16 %v484
        %v616 = vunpack.c.h.b16 %v484
        %v617 = vunpack.c.l.b16 %v485
        %v618 = vunpack.c.h.b16 %v485
        %v619 = vunpack.c.l.b16 %v486
        %v620 = vunpack.c.h.b16 %v486
        %v621 = vunpack.c.l.b16 %v487
        %v622 = vunpack.c.h.b16 %v487
        %v623 = vunpack.c.l.b16 %v488
        %v624 = vunpack.c.h.b16 %v488
        %v625 = vunpack.c.l.b16 %v489
        %v626 = vunpack.c.h.b16 %v489
        %v627 = vunpack.c.l.b16 %v490
        %v628 = vunpack.c.h.b16 %v490
        %v629 = vunpack.c.l.b16 %v491
        %v630 = vunpack.c.h.b16 %v491
        %v631 = vunpack.c.l.b16 %v492
        %v632 = vunpack.c.h.b16 %v492
        %v633 = vunpack.c.l.b16 %v493
        %v634 = vunpack.c.h.b16 %v493
        %v635 = vunpack.c.l.b16 %v494
        %v636 = vunpack.c.h.b16 %v494
        %v637 = vunpack.c.l.b16 %v495
        %v638 = vunpack.c.h.b16 %v495
        %v639 = vunpack.c.l.b16 %v496
        %v640 = vunpack.c.h.b16 %v496
        %v641 = vpack.c.b16 %v611, %v609
        %v642 = vpack.c.b16 %v612, %v610
        %v643 = vpack.c.b16 %v615, %v613
        %v644 = vpack.c.b16 %v616, %v614
        %v645 = vpack.c.b16 %v619, %v617
        %v646 = vpack.c.b16 %v620, %v618
        %v647 = vpack.c.b16 %v623, %v621
        %v648 = vpack.c.b16 %v624, %v622
        %v649 = vpack.c.b16 %v627, %v625
        %v650 = vpack.c.b16 %v628, %v626
        %v651 = vpack.c.b16 %v631, %v629
        %v652 = vpack.c.b16 %v632, %v630
        %v653 = vpack.c.b16 %v635, %v633
        %v654 = vpack.c.b16 %v636, %v634
        %v655 = vpack.c.b16 %v639, %v637
        %v656 = vpack.c.b16 %v640, %v638
        %673 = vmatprep.subr.bf16.mxu0 %v642
        %674 = vmatpush1.bf16.msra.mxu0 %v641
        %675 = vmatprep.subr.bf16.mxu0 %v644
        %676 = vmatpush1.bf16.msra.mxu0 %v643
        %677 = vmatprep.subr.bf16.mxu0 %v646
        %678 = vmatpush1.bf16.msra.mxu0 %v645
        %679 = vmatprep.subr.bf16.mxu0 %v648
        %680 = vmatpush1.bf16.msra.mxu0 %v647
        %681 = vmatprep.subr.bf16.mxu0 %v650
        %682 = vmatpush1.bf16.msra.mxu0 %v649
        %683 = vmatprep.subr.bf16.mxu0 %v652
        %684 = vmatpush1.bf16.msra.mxu0 %v651
        %685 = vmatprep.subr.bf16.mxu0 %v654
        %686 = vmatpush1.bf16.msra.mxu0 %v653
        %687 = vmatprep.subr.bf16.mxu0 %v656
        %688 = vmatpush1.bf16.msra.mxu0 %v655
        %689 = vmatprep.subr.bf16.mxu0 0
        %690 = vmatpush1.bf16.msra.mxu0 0
        %691 = vmatprep.subr.bf16.mxu0 0
        %692 = vmatpush1.bf16.msra.mxu0 0
        %693 = vmatprep.subr.bf16.mxu0 0
        %694 = vmatpush1.bf16.msra.mxu0 0
        %695 = vmatprep.subr.bf16.mxu0 0
        %696 = vmatpush1.bf16.msra.mxu0 0
        %697 = vmatprep.subr.bf16.mxu0 0
        %698 = vmatpush1.bf16.msra.mxu0 0
        %699 = vmatprep.subr.bf16.mxu0 0
        %700 = vmatpush1.bf16.msra.mxu0 0
        %701 = vmatprep.subr.bf16.mxu0 0
        %702 = vmatpush1.bf16.msra.mxu0 0
        %703 = vmatprep.subr.bf16.mxu0 0
        %704 = vmatpush1.bf16.msra.mxu0 0
        %705 = vmatprep.mubr.bf16.mxu0 0
        %706 = vmatmul.mubr.bf16.gmra.mrb[0].mxu0 %v561
        %v707 = vpop.f32.mrb[0].mxu0
        %v708 = vadd.f32 0.0, %v707
        %v709 = vpop.f32.mrb[0].mxu0
        %v710 = vadd.f32 0.0, %v709
        %v711 = vpop.f32.mrb[0].mxu0
        %v712 = vadd.f32 0.0, %v711
        %v713 = vpop.f32.mrb[0].mxu0
        %v714 = vadd.f32 0.0, %v713
        %715 = vmatprep.mubr.bf16.mxu0 0
        %716 = vmatmul.mubr.bf16.gmra.mrb[0].mxu0 %v562
        %v717 = vpop.f32.mrb[0].mxu0
        %v718 = vadd.f32 0.0, %v717
        %v719 = vpop.f32.mrb[0].mxu0
        %v720 = vadd.f32 0.0, %v719
        %v721 = vpop.f32.mrb[0].mxu0
        %v722 = vadd.f32 0.0, %v721
        %v723 = vpop.f32.mrb[0].mxu0
        %v724 = vadd.f32 0.0, %v723
        %725 = vmatprep.mubr.bf16.mxu0 0
        %726 = vmatmul.mubr.bf16.gmra.mrb[0].mxu0 %v563
        %v727 = vpop.f32.mrb[0].mxu0
        %v728 = vadd.f32 0.0, %v727
        %v729 = vpop.f32.mrb[0].mxu0
        %v730 = vadd.f32 0.0, %v729
        %v731 = vpop.f32.mrb[0].mxu0
        %v732 = vadd.f32 0.0, %v731
        %v733 = vpop.f32.mrb[0].mxu0
        %v734 = vadd.f32 0.0, %v733
        %735 = vmatprep.mubr.bf16.mxu0 0
        %736 = vmatmul.mubr.bf16.gmra.mrb[0].mxu0 %v564
        %v737 = vpop.f32.mrb[0].mxu0
        %v738 = vadd.f32 0.0, %v737
        %v739 = vpop.f32.mrb[0].mxu0
        %v740 = vadd.f32 0.0, %v739
        %v741 = vpop.f32.mrb[0].mxu0
        %v742 = vadd.f32 0.0, %v741
        %v743 = vpop.f32.mrb[0].mxu0
        %v744 = vadd.f32 0.0, %v743
        %745 = vmatprep.mubr.bf16.mxu0 0
        %746 = vmatmul.mubr.bf16.gmra.mrb[0].mxu0 %v565
        %v747 = vpop.f32.mrb[0].mxu0
        %v748 = vadd.f32 0.0, %v747
        %v749 = vpop.f32.mrb[0].mxu0
        %v750 = vadd.f32 0.0, %v749
        %v751 = vpop.f32.mrb[0].mxu0
        %v752 = vadd.f32 0.0, %v751
        %v753 = vpop.f32.mrb[0].mxu0
        %v754 = vadd.f32 0.0, %v753
        %755 = vmatprep.mubr.bf16.mxu0 0
        %756 = vmatmul.mubr.bf16.gmra.mrb[0].mxu0 %v566
        %v757 = vpop.f32.mrb[0].mxu0
        %v758 = vadd.f32 0.0, %v757
        %v759 = vpop.f32.mrb[0].mxu0
        %v760 = vadd.f32 0.0, %v759
        %v761 = vpop.f32.mrb[0].mxu0
        %v762 = vadd.f32 0.0, %v761
        %v763 = vpop.f32.mrb[0].mxu0
        %v764 = vadd.f32 0.0, %v763
        %765 = vmatprep.mubr.bf16.mxu0 0
        %766 = vmatmul.mubr.bf16.gmra.mrb[0].mxu0 %v567
        %v767 = vpop.f32.mrb[0].mxu0
        %v768 = vadd.f32 0.0, %v767
        %v769 = vpop.f32.mrb[0].mxu0
        %v770 = vadd.f32 0.0, %v769
        %v771 = vpop.f32.mrb[0].mxu0
        %v772 = vadd.f32 0.0, %v771
        %v773 = vpop.f32.mrb[0].mxu0
        %v774 = vadd.f32 0.0, %v773
        %775 = vmatprep.mubr.bf16.mxu0 0
        %776 = vmatmul.mubr.bf16.gmra.mrb[0].mxu0 %v568
        %v777 = vpop.f32.mrb[0].mxu0
        %v778 = vadd.f32 0.0, %v777
        %v779 = vpop.f32.mrb[0].mxu0
        %v780 = vadd.f32 0.0, %v779
        %v781 = vpop.f32.mrb[0].mxu0
        %v782 = vadd.f32 0.0, %v781
        %v783 = vpop.f32.mrb[0].mxu0
        %v784 = vadd.f32 0.0, %v783
        %785 = vmatprep.mubr.bf16.mxu0 0
        %786 = vmatmul.mubr.bf16.gmra.mrb[0].mxu0 %v569
        %v787 = vpop.f32.mrb[0].mxu0
        %v788 = vadd.f32 0.0, %v787
        %v789 = vpop.f32.mrb[0].mxu0
        %v790 = vadd.f32 0.0, %v789
        %v791 = vpop.f32.mrb[0].mxu0
        %v792 = vadd.f32 0.0, %v791
        %v793 = vpop.f32.mrb[0].mxu0
        %v794 = vadd.f32 0.0, %v793
        %795 = vmatprep.mubr.bf16.mxu0 0
        %796 = vmatmul.mubr.bf16.gmra.mrb[0].mxu0 %v570
        %v797 = vpop.f32.mrb[0].mxu0
        %v798 = vadd.f32 0.0, %v797
        %v799 = vpop.f32.mrb[0].mxu0
        %v800 = vadd.f32 0.0, %v799
        %v801 = vpop.f32.mrb[0].mxu0
        %v802 = vadd.f32 0.0, %v801
        %v803 = vpop.f32.mrb[0].mxu0
        %v804 = vadd.f32 0.0, %v803
        %805 = vmatprep.mubr.bf16.mxu0 0
        %806 = vmatmul.mubr.bf16.gmra.mrb[0].mxu0 %v571
        %v807 = vpop.f32.mrb[0].mxu0
        %v808 = vadd.f32 0.0, %v807
        %v809 = vpop.f32.mrb[0].mxu0
        %v810 = vadd.f32 0.0, %v809
        %v811 = vpop.f32.mrb[0].mxu0
        %v812 = vadd.f32 0.0, %v811
        %v813 = vpop.f32.mrb[0].mxu0
        %v814 = vadd.f32 0.0, %v813
        %815 = vmatprep.mubr.bf16.mxu0 0
        %816 = vmatmul.mubr.bf16.gmra.mrb[0].mxu0 %v572
        %v817 = vpop.f32.mrb[0].mxu0
        %v818 = vadd.f32 0.0, %v817
        %v819 = vpop.f32.mrb[0].mxu0
        %v820 = vadd.f32 0.0, %v819
        %v821 = vpop.f32.mrb[0].mxu0
        %v822 = vadd.f32 0.0, %v821
        %v823 = vpop.f32.mrb[0].mxu0
        %v824 = vadd.f32 0.0, %v823
        %825 = vmatprep.mubr.bf16.mxu0 0
        %826 = vmatmul.mubr.bf16.gmra.mrb[0].mxu0 %v573
        %v827 = vpop.f32.mrb[0].mxu0
        %v828 = vadd.f32 0.0, %v827
        %v829 = vpop.f32.mrb[0].mxu0
        %v830 = vadd.f32 0.0, %v829
        %v831 = vpop.f32.mrb[0].mxu0
        %v832 = vadd.f32 0.0, %v831
        %v833 = vpop.f32.mrb[0].mxu0
        %v834 = vadd.f32 0.0, %v833
        %835 = vmatprep.mubr.bf16.mxu0 0
        %836 = vmatmul.mubr.bf16.gmra.mrb[0].mxu0 %v574
        %v837 = vpop.f32.mrb[0].mxu0
        %v838 = vadd.f32 0.0, %v837
        %v839 = vpop.f32.mrb[0].mxu0
        %v840 = vadd.f32 0.0, %v839
        %v841 = vpop.f32.mrb[0].mxu0
        %v842 = vadd.f32 0.0, %v841
        %v843 = vpop.f32.mrb[0].mxu0
        %v844 = vadd.f32 0.0, %v843
        %845 = vmatprep.mubr.bf16.mxu0 0
        %846 = vmatmul.mubr.bf16.gmra.mrb[0].mxu0 %v575
        %v847 = vpop.f32.mrb[0].mxu0
        %v848 = vadd.f32 0.0, %v847
        %v849 = vpop.f32.mrb[0].mxu0
        %v850 = vadd.f32 0.0, %v849
        %v851 = vpop.f32.mrb[0].mxu0
        %v852 = vadd.f32 0.0, %v851
        %v853 = vpop.f32.mrb[0].mxu0
        %v854 = vadd.f32 0.0, %v853
        %855 = vmatprep.mubr.bf16.mxu0 0
        %856 = vmatmul.mubr.bf16.gmra.mrb[0].mxu0 %v576
        %v857 = vpop.f32.mrb[0].mxu0
        %v858 = vadd.f32 0.0, %v857
        %v859 = vpop.f32.mrb[0].mxu0
        %v860 = vadd.f32 0.0, %v859
        %v861 = vpop.f32.mrb[0].mxu0
        %v862 = vadd.f32 0.0, %v861
        %v863 = vpop.f32.mrb[0].mxu0
        %v864 = vadd.f32 0.0, %v863
        %865 = vdwg.mxu0
        %v866 = vld [vmem:[#allocation2] sm:$0xff]
        %v867 = vld [vmem:[#allocation2 + $0x8] sm:$0xff]
        %v868 = vld [vmem:[#allocation2 + $0x10] sm:$0xff]
        %v869 = vld [vmem:[#allocation2 + $0x18] sm:$0xff]
        %v870 = vld [vmem:[#allocation2 + $0x20] sm:$0xff]
        %v871 = vld [vmem:[#allocation2 + $0x28] sm:$0xff]
        %v872 = vld [vmem:[#allocation2 + $0x30] sm:$0xff]
        %v873 = vld [vmem:[#allocation2 + $0x38] sm:$0xff]
        %v874 = vld [vmem:[#allocation2 + $0x40] sm:$0xff]
        %v875 = vld [vmem:[#allocation2 + $0x48] sm:$0xff]
        %v876 = vld [vmem:[#allocation2 + $0x50] sm:$0xff]
        %v877 = vld [vmem:[#allocation2 + $0x58] sm:$0xff]
        %v878 = vld [vmem:[#allocation2 + $0x60] sm:$0xff]
        %v879 = vld [vmem:[#allocation2 + $0x68] sm:$0xff]
        %v880 = vld [vmem:[#allocation2 + $0x70] sm:$0xff]
        %v881 = vld [vmem:[#allocation2 + $0x78] sm:$0xff]
        %v882 = vld [vmem:[#allocation2 + $0x80] sm:$0xff]
        %v883 = vld [vmem:[#allocation2 + $0x88] sm:$0xff]
        %v884 = vld [vmem:[#allocation2 + $0x90] sm:$0xff]
        %v885 = vld [vmem:[#allocation2 + $0x98] sm:$0xff]
        %v886 = vld [vmem:[#allocation2 + $0xa0] sm:$0xff]
        %v887 = vld [vmem:[#allocation2 + $0xa8] sm:$0xff]
        %v888 = vld [vmem:[#allocation2 + $0xb0] sm:$0xff]
        %v889 = vld [vmem:[#allocation2 + $0xb8] sm:$0xff]
        %v890 = vld [vmem:[#allocation2 + $0xc0] sm:$0xff]
        %v891 = vld [vmem:[#allocation2 + $0xc8] sm:$0xff]
        %v892 = vld [vmem:[#allocation2 + $0xd0] sm:$0xff]
        %v893 = vld [vmem:[#allocation2 + $0xd8] sm:$0xff]
        %v894 = vld [vmem:[#allocation2 + $0xe0] sm:$0xff]
        %v895 = vld [vmem:[#allocation2 + $0xe8] sm:$0xff]
        %v896 = vld [vmem:[#allocation2 + $0xf0] sm:$0xff]
        %v897 = vld [vmem:[#allocation2 + $0xf8] sm:$0xff]
        %v898 = vld [vmem:[#allocation2 + $0x100] sm:$0xff]
        %v899 = vld [vmem:[#allocation2 + $0x108] sm:$0xff]
        %v900 = vld [vmem:[#allocation2 + $0x110] sm:$0xff]
        %v901 = vld [vmem:[#allocation2 + $0x118] sm:$0xff]
        %v902 = vld [vmem:[#allocation2 + $0x120] sm:$0xff]
        %v903 = vld [vmem:[#allocation2 + $0x128] sm:$0xff]
        %v904 = vld [vmem:[#allocation2 + $0x130] sm:$0xff]
        %v905 = vld [vmem:[#allocation2 + $0x138] sm:$0xff]
        %v906 = vld [vmem:[#allocation2 + $0x140] sm:$0xff]
        %v907 = vld [vmem:[#allocation2 + $0x148] sm:$0xff]
        %v908 = vld [vmem:[#allocation2 + $0x150] sm:$0xff]
        %v909 = vld [vmem:[#allocation2 + $0x158] sm:$0xff]
        %v910 = vld [vmem:[#allocation2 + $0x160] sm:$0xff]
        %v911 = vld [vmem:[#allocation2 + $0x168] sm:$0xff]
        %v912 = vld [vmem:[#allocation2 + $0x170] sm:$0xff]
        %v913 = vld [vmem:[#allocation2 + $0x178] sm:$0xff]
        %v914 = vld [vmem:[#allocation2 + $0x180] sm:$0xff]
        %v915 = vld [vmem:[#allocation2 + $0x188] sm:$0xff]
        %v916 = vld [vmem:[#allocation2 + $0x190] sm:$0xff]
        %v917 = vld [vmem:[#allocation2 + $0x198] sm:$0xff]
        %v918 = vld [vmem:[#allocation2 + $0x1a0] sm:$0xff]
        %v919 = vld [vmem:[#allocation2 + $0x1a8] sm:$0xff]
        %v920 = vld [vmem:[#allocation2 + $0x1b0] sm:$0xff]
        %v921 = vld [vmem:[#allocation2 + $0x1b8] sm:$0xff]
        %v922 = vld [vmem:[#allocation2 + $0x1c0] sm:$0xff]
        %v923 = vld [vmem:[#allocation2 + $0x1c8] sm:$0xff]
        %v924 = vld [vmem:[#allocation2 + $0x1d0] sm:$0xff]
        %v925 = vld [vmem:[#allocation2 + $0x1d8] sm:$0xff]
        %v926 = vld [vmem:[#allocation2 + $0x1e0] sm:$0xff]
        %v927 = vld [vmem:[#allocation2 + $0x1e8] sm:$0xff]
        %v928 = vld [vmem:[#allocation2 + $0x1f0] sm:$0xff]
        %v929 = vld [vmem:[#allocation2 + $0x1f8] sm:$0xff]
        %v930 = vld [vmem:[%s319] sm:$0xff]
        %v931 = vld [vmem:[%s319 + $0x8] sm:$0xff]
        %v932 = vld [vmem:[%s319 + $0x10] sm:$0xff]
        %v933 = vld [vmem:[%s319 + $0x18] sm:$0xff]
        %v934 = vld [vmem:[%s319 + $0x20] sm:$0xff]
        %v935 = vld [vmem:[%s319 + $0x28] sm:$0xff]
        %v936 = vld [vmem:[%s319 + $0x30] sm:$0xff]
        %v937 = vld [vmem:[%s319 + $0x38] sm:$0xff]
        %v938 = vld [vmem:[%s319 + $0x40] sm:$0xff]
        %v939 = vld [vmem:[%s319 + $0x48] sm:$0xff]
        %v940 = vld [vmem:[%s319 + $0x50] sm:$0xff]
        %v941 = vld [vmem:[%s319 + $0x58] sm:$0xff]
        %v942 = vld [vmem:[%s319 + $0x60] sm:$0xff]
        %v943 = vld [vmem:[%s319 + $0x68] sm:$0xff]
        %v944 = vld [vmem:[%s319 + $0x70] sm:$0xff]
        %v945 = vld [vmem:[%s319 + $0x78] sm:$0xff]
        %v946 = vld [vmem:[%s319 + $0x80] sm:$0xff]
        %v947 = vld [vmem:[%s319 + $0x88] sm:$0xff]
        %v948 = vld [vmem:[%s319 + $0x90] sm:$0xff]
        %v949 = vld [vmem:[%s319 + $0x98] sm:$0xff]
        %v950 = vld [vmem:[%s319 + $0xa0] sm:$0xff]
        %v951 = vld [vmem:[%s319 + $0xa8] sm:$0xff]
        %v952 = vld [vmem:[%s319 + $0xb0] sm:$0xff]
        %v953 = vld [vmem:[%s319 + $0xb8] sm:$0xff]
        %v954 = vld [vmem:[%s319 + $0xc0] sm:$0xff]
        %v955 = vld [vmem:[%s319 + $0xc8] sm:$0xff]
        %v956 = vld [vmem:[%s319 + $0xd0] sm:$0xff]
        %v957 = vld [vmem:[%s319 + $0xd8] sm:$0xff]
        %v958 = vld [vmem:[%s319 + $0xe0] sm:$0xff]
        %v959 = vld [vmem:[%s319 + $0xe8] sm:$0xff]
        %v960 = vld [vmem:[%s319 + $0xf0] sm:$0xff]
        %v961 = vld [vmem:[%s319 + $0xf8] sm:$0xff]
        %v962 = vpack.c.bf16 %v712, %v708
        %v963 = vpack.c.bf16 %v714, %v710
        %v964 = vpack.c.bf16 %v722, %v718
        %v965 = vpack.c.bf16 %v724, %v720
        %v966 = vpack.c.bf16 %v732, %v728
        %v967 = vpack.c.bf16 %v734, %v730
        %v968 = vpack.c.bf16 %v742, %v738
        %v969 = vpack.c.bf16 %v744, %v740
        %v970 = vpack.c.bf16 %v752, %v748
        %v971 = vpack.c.bf16 %v754, %v750
        %v972 = vpack.c.bf16 %v762, %v758
        %v973 = vpack.c.bf16 %v764, %v760
        %v974 = vpack.c.bf16 %v772, %v768
        %v975 = vpack.c.bf16 %v774, %v770
        %v976 = vpack.c.bf16 %v782, %v778
        %v977 = vpack.c.bf16 %v784, %v780
        %v978 = vpack.c.bf16 %v792, %v788
        %v979 = vpack.c.bf16 %v794, %v790
        %v980 = vpack.c.bf16 %v802, %v798
        %v981 = vpack.c.bf16 %v804, %v800
        %v982 = vpack.c.bf16 %v812, %v808
        %v983 = vpack.c.bf16 %v814, %v810
        %v984 = vpack.c.bf16 %v822, %v818
        %v985 = vpack.c.bf16 %v824, %v820
        %v986 = vpack.c.bf16 %v832, %v828
        %v987 = vpack.c.bf16 %v834, %v830
        %v988 = vpack.c.bf16 %v842, %v838
        %v989 = vpack.c.bf16 %v844, %v840
        %v990 = vpack.c.bf16 %v852, %v848
        %v991 = vpack.c.bf16 %v854, %v850
        %v992 = vpack.c.bf16 %v862, %v858
        %v993 = vpack.c.bf16 %v864, %v860
        %v1026 = vunpack.c.l.b16 %v930
        %v1027 = vunpack.c.h.b16 %v930
        %v1028 = vunpack.c.l.b16 %v931
        %v1029 = vunpack.c.h.b16 %v931
        %v1030 = vunpack.c.l.b16 %v932
        %v1031 = vunpack.c.h.b16 %v932
        %v1032 = vunpack.c.l.b16 %v933
        %v1033 = vunpack.c.h.b16 %v933
        %v1034 = vunpack.c.l.b16 %v934
        %v1035 = vunpack.c.h.b16 %v934
        %v1036 = vunpack.c.l.b16 %v935
        %v1037 = vunpack.c.h.b16 %v935
        %v1038 = vunpack.c.l.b16 %v936
        %v1039 = vunpack.c.h.b16 %v936
        %v1040 = vunpack.c.l.b16 %v937
        %v1041 = vunpack.c.h.b16 %v937
        %v1042 = vunpack.c.l.b16 %v938
        %v1043 = vunpack.c.h.b16 %v938
        %v1044 = vunpack.c.l.b16 %v939
        %v1045 = vunpack.c.h.b16 %v939
        %v1046 = vunpack.c.l.b16 %v940
        %v1047 = vunpack.c.h.b16 %v940
        %v1048 = vunpack.c.l.b16 %v941
        %v1049 = vunpack.c.h.b16 %v941
        %v1050 = vunpack.c.l.b16 %v942
        %v1051 = vunpack.c.h.b16 %v942
        %v1052 = vunpack.c.l.b16 %v943
        %v1053 = vunpack.c.h.b16 %v943
        %v1054 = vunpack.c.l.b16 %v944
        %v1055 = vunpack.c.h.b16 %v944
        %v1056 = vunpack.c.l.b16 %v945
        %v1057 = vunpack.c.h.b16 %v945
        %v1058 = vunpack.c.l.b16 %v946
        %v1059 = vunpack.c.h.b16 %v946
        %v1060 = vunpack.c.l.b16 %v947
        %v1061 = vunpack.c.h.b16 %v947
        %v1062 = vunpack.c.l.b16 %v948
        %v1063 = vunpack.c.h.b16 %v948
        %v1064 = vunpack.c.l.b16 %v949
        %v1065 = vunpack.c.h.b16 %v949
        %v1066 = vunpack.c.l.b16 %v950
        %v1067 = vunpack.c.h.b16 %v950
        %v1068 = vunpack.c.l.b16 %v951
        %v1069 = vunpack.c.h.b16 %v951
        %v1070 = vunpack.c.l.b16 %v952
        %v1071 = vunpack.c.h.b16 %v952
        %v1072 = vunpack.c.l.b16 %v953
        %v1073 = vunpack.c.h.b16 %v953
        %v1074 = vunpack.c.l.b16 %v954
        %v1075 = vunpack.c.h.b16 %v954
        %v1076 = vunpack.c.l.b16 %v955
        %v1077 = vunpack.c.h.b16 %v955
        %v1078 = vunpack.c.l.b16 %v956
        %v1079 = vunpack.c.h.b16 %v956
        %v1080 = vunpack.c.l.b16 %v957
        %v1081 = vunpack.c.h.b16 %v957
        %v1082 = vunpack.c.l.b16 %v958
        %v1083 = vunpack.c.h.b16 %v958
        %v1084 = vunpack.c.l.b16 %v959
        %v1085 = vunpack.c.h.b16 %v959
        %v1086 = vunpack.c.l.b16 %v960
        %v1087 = vunpack.c.h.b16 %v960
        %v1088 = vunpack.c.l.b16 %v961
        %v1089 = vunpack.c.h.b16 %v961
        %v1090 = vpack.c.b16 %v1028, %v1026
        %v1091 = vpack.c.b16 %v1029, %v1027
        %v1092 = vpack.c.b16 %v1032, %v1030
        %v1093 = vpack.c.b16 %v1033, %v1031
        %v1094 = vpack.c.b16 %v1036, %v1034
        %v1095 = vpack.c.b16 %v1037, %v1035
        %v1096 = vpack.c.b16 %v1040, %v1038
        %v1097 = vpack.c.b16 %v1041, %v1039
        %v1098 = vpack.c.b16 %v1044, %v1042
        %v1099 = vpack.c.b16 %v1045, %v1043
        %v1100 = vpack.c.b16 %v1048, %v1046
        %v1101 = vpack.c.b16 %v1049, %v1047
        %v1102 = vpack.c.b16 %v1052, %v1050
        %v1103 = vpack.c.b16 %v1053, %v1051
        %v1104 = vpack.c.b16 %v1056, %v1054
        %v1105 = vpack.c.b16 %v1057, %v1055
        %v1106 = vpack.c.b16 %v1060, %v1058
        %v1107 = vpack.c.b16 %v1061, %v1059
        %v1108 = vpack.c.b16 %v1064, %v1062
        %v1109 = vpack.c.b16 %v1065, %v1063
        %v1110 = vpack.c.b16 %v1068, %v1066
        %v1111 = vpack.c.b16 %v1069, %v1067
        %v1112 = vpack.c.b16 %v1072, %v1070
        %v1113 = vpack.c.b16 %v1073, %v1071
        %v1114 = vpack.c.b16 %v1076, %v1074
        %v1115 = vpack.c.b16 %v1077, %v1075
        %v1116 = vpack.c.b16 %v1080, %v1078
        %v1117 = vpack.c.b16 %v1081, %v1079
        %v1118 = vpack.c.b16 %v1084, %v1082
        %v1119 = vpack.c.b16 %v1085, %v1083
        %v1120 = vpack.c.b16 %v1088, %v1086
        %v1121 = vpack.c.b16 %v1089, %v1087
        %1154 = vmatprep.subr.bf16.mxu0 %v963
        %1155 = vmatpush1.bf16.msra.mxu0 %v962
        %1156 = vmatprep.subr.bf16.mxu0 %v965
        %1157 = vmatpush1.bf16.msra.mxu0 %v964
        %1158 = vmatprep.subr.bf16.mxu0 %v967
        %1159 = vmatpush1.bf16.msra.mxu0 %v966
        %1160 = vmatprep.subr.bf16.mxu0 %v969
        %1161 = vmatpush1.bf16.msra.mxu0 %v968
        %1162 = vmatprep.subr.bf16.mxu0 %v971
        %1163 = vmatpush1.bf16.msra.mxu0 %v970
        %1164 = vmatprep.subr.bf16.mxu0 %v973
        %1165 = vmatpush1.bf16.msra.mxu0 %v972
        %1166 = vmatprep.subr.bf16.mxu0 %v975
        %1167 = vmatpush1.bf16.msra.mxu0 %v974
        %1168 = vmatprep.subr.bf16.mxu0 %v977
        %1169 = vmatpush1.bf16.msra.mxu0 %v976
        %1170 = vmatprep.subr.bf16.mxu0 %v979
        %1171 = vmatpush1.bf16.msra.mxu0 %v978
        %1172 = vmatprep.subr.bf16.mxu0 %v981
        %1173 = vmatpush1.bf16.msra.mxu0 %v980
        %1174 = vmatprep.subr.bf16.mxu0 %v983
        %1175 = vmatpush1.bf16.msra.mxu0 %v982
        %1176 = vmatprep.subr.bf16.mxu0 %v985
        %1177 = vmatpush1.bf16.msra.mxu0 %v984
        %1178 = vmatprep.subr.bf16.mxu0 %v987
        %1179 = vmatpush1.bf16.msra.mxu0 %v986
        %1180 = vmatprep.subr.bf16.mxu0 %v989
        %1181 = vmatpush1.bf16.msra.mxu0 %v988
        %1182 = vmatprep.subr.bf16.mxu0 %v991
        %1183 = vmatpush1.bf16.msra.mxu0 %v990
        %1184 = vmatprep.subr.bf16.mxu0 %v993
        %1185 = vmatpush1.bf16.msra.mxu0 %v992
        %1186 = vmatprep.mubr.bf16.mxu0 %v1091
        %1187 = vmatmul.mubr.bf16.gmra.mrb[0].mxu0 %v1090
        %v1188 = vpop.f32.mrb[0].mxu0
        %v1189 = vadd.f32 0.0, %v1188
        %v1190 = vpop.f32.mrb[0].mxu0
        %v1191 = vadd.f32 0.0, %v1190
        %v1192 = vpop.f32.mrb[0].mxu0
        %v1193 = vadd.f32 0.0, %v1192
        %v1194 = vpop.f32.mrb[0].mxu0
        %v1195 = vadd.f32 0.0, %v1194
        %1196 = vmatprep.mubr.bf16.mxu0 %v1093
        %1197 = vmatmul.mubr.bf16.gmra.mrb[0].mxu0 %v1092
        %v1198 = vpop.f32.mrb[0].mxu0
        %v1199 = vadd.f32 0.0, %v1198
        %v1200 = vpop.f32.mrb[0].mxu0
        %v1201 = vadd.f32 0.0, %v1200
        %v1202 = vpop.f32.mrb[0].mxu0
        %v1203 = vadd.f32 0.0, %v1202
        %v1204 = vpop.f32.mrb[0].mxu0
        %v1205 = vadd.f32 0.0, %v1204
        %1206 = vmatprep.mubr.bf16.mxu0 %v1095
        %1207 = vmatmul.mubr.bf16.gmra.mrb[0].mxu0 %v1094
        %v1208 = vpop.f32.mrb[0].mxu0
        %v1209 = vadd.f32 0.0, %v1208
        %v1210 = vpop.f32.mrb[0].mxu0
        %v1211 = vadd.f32 0.0, %v1210
        %v1212 = vpop.f32.mrb[0].mxu0
        %v1213 = vadd.f32 0.0, %v1212
        %v1214 = vpop.f32.mrb[0].mxu0
        %v1215 = vadd.f32 0.0, %v1214
        %1216 = vmatprep.mubr.bf16.mxu0 %v1097
        %1217 = vmatmul.mubr.bf16.gmra.mrb[0].mxu0 %v1096
        %v1218 = vpop.f32.mrb[0].mxu0
        %v1219 = vadd.f32 0.0, %v1218
        %v1220 = vpop.f32.mrb[0].mxu0
        %v1221 = vadd.f32 0.0, %v1220
        %v1222 = vpop.f32.mrb[0].mxu0
        %v1223 = vadd.f32 0.0, %v1222
        %v1224 = vpop.f32.mrb[0].mxu0
        %v1225 = vadd.f32 0.0, %v1224
        %1226 = vmatprep.mubr.bf16.mxu0 %v1099
        %1227 = vmatmul.mubr.bf16.gmra.mrb[0].mxu0 %v1098
        %v1228 = vpop.f32.mrb[0].mxu0
        %v1229 = vadd.f32 0.0, %v1228
        %v1230 = vpop.f32.mrb[0].mxu0
        %v1231 = vadd.f32 0.0, %v1230
        %v1232 = vpop.f32.mrb[0].mxu0
        %v1233 = vadd.f32 0.0, %v1232
        %v1234 = vpop.f32.mrb[0].mxu0
        %v1235 = vadd.f32 0.0, %v1234
        %1236 = vmatprep.mubr.bf16.mxu0 %v1101
        %1237 = vmatmul.mubr.bf16.gmra.mrb[0].mxu0 %v1100
        %v1238 = vpop.f32.mrb[0].mxu0
        %v1239 = vadd.f32 0.0, %v1238
        %v1240 = vpop.f32.mrb[0].mxu0
        %v1241 = vadd.f32 0.0, %v1240
        %v1242 = vpop.f32.mrb[0].mxu0
        %v1243 = vadd.f32 0.0, %v1242
        %v1244 = vpop.f32.mrb[0].mxu0
        %v1245 = vadd.f32 0.0, %v1244
        %1246 = vmatprep.mubr.bf16.mxu0 %v1103
        %1247 = vmatmul.mubr.bf16.gmra.mrb[0].mxu0 %v1102
        %v1248 = vpop.f32.mrb[0].mxu0
        %v1249 = vadd.f32 0.0, %v1248
        %v1250 = vpop.f32.mrb[0].mxu0
        %v1251 = vadd.f32 0.0, %v1250
        %v1252 = vpop.f32.mrb[0].mxu0
        %v1253 = vadd.f32 0.0, %v1252
        %v1254 = vpop.f32.mrb[0].mxu0
        %v1255 = vadd.f32 0.0, %v1254
        %1256 = vmatprep.mubr.bf16.mxu0 %v1105
        %1257 = vmatmul.mubr.bf16.gmra.mrb[0].mxu0 %v1104
        %v1258 = vpop.f32.mrb[0].mxu0
        %v1259 = vadd.f32 0.0, %v1258
        %v1260 = vpop.f32.mrb[0].mxu0
        %v1261 = vadd.f32 0.0, %v1260
        %v1262 = vpop.f32.mrb[0].mxu0
        %v1263 = vadd.f32 0.0, %v1262
        %v1264 = vpop.f32.mrb[0].mxu0
        %v1265 = vadd.f32 0.0, %v1264
        %1266 = vmatprep.mubr.bf16.mxu0 %v1107
        %1267 = vmatmul.mubr.bf16.gmra.mrb[0].mxu0 %v1106
        %v1268 = vpop.f32.mrb[0].mxu0
        %v1269 = vadd.f32 0.0, %v1268
        %v1270 = vpop.f32.mrb[0].mxu0
        %v1271 = vadd.f32 0.0, %v1270
        %v1272 = vpop.f32.mrb[0].mxu0
        %v1273 = vadd.f32 0.0, %v1272
        %v1274 = vpop.f32.mrb[0].mxu0
        %v1275 = vadd.f32 0.0, %v1274
        %1276 = vmatprep.mubr.bf16.mxu0 %v1109
        %1277 = vmatmul.mubr.bf16.gmra.mrb[0].mxu0 %v1108
        %v1278 = vpop.f32.mrb[0].mxu0
        %v1279 = vadd.f32 0.0, %v1278
        %v1280 = vpop.f32.mrb[0].mxu0
        %v1281 = vadd.f32 0.0, %v1280
        %v1282 = vpop.f32.mrb[0].mxu0
        %v1283 = vadd.f32 0.0, %v1282
        %v1284 = vpop.f32.mrb[0].mxu0
        %v1285 = vadd.f32 0.0, %v1284
        %1286 = vmatprep.mubr.bf16.mxu0 %v1111
        %1287 = vmatmul.mubr.bf16.gmra.mrb[0].mxu0 %v1110
        %v1288 = vpop.f32.mrb[0].mxu0
        %v1289 = vadd.f32 0.0, %v1288
        %v1290 = vpop.f32.mrb[0].mxu0
        %v1291 = vadd.f32 0.0, %v1290
        %v1292 = vpop.f32.mrb[0].mxu0
        %v1293 = vadd.f32 0.0, %v1292
        %v1294 = vpop.f32.mrb[0].mxu0
        %v1295 = vadd.f32 0.0, %v1294
        %1296 = vmatprep.mubr.bf16.mxu0 %v1113
        %1297 = vmatmul.mubr.bf16.gmra.mrb[0].mxu0 %v1112
        %v1298 = vpop.f32.mrb[0].mxu0
        %v1299 = vadd.f32 0.0, %v1298
        %v1300 = vpop.f32.mrb[0].mxu0
        %v1301 = vadd.f32 0.0, %v1300
        %v1302 = vpop.f32.mrb[0].mxu0
        %v1303 = vadd.f32 0.0, %v1302
        %v1304 = vpop.f32.mrb[0].mxu0
        %v1305 = vadd.f32 0.0, %v1304
        %1306 = vmatprep.mubr.bf16.mxu0 %v1115
        %1307 = vmatmul.mubr.bf16.gmra.mrb[0].mxu0 %v1114
        %v1308 = vpop.f32.mrb[0].mxu0
        %v1309 = vadd.f32 0.0, %v1308
        %v1310 = vpop.f32.mrb[0].mxu0
        %v1311 = vadd.f32 0.0, %v1310
        %v1312 = vpop.f32.mrb[0].mxu0
        %v1313 = vadd.f32 0.0, %v1312
        %v1314 = vpop.f32.mrb[0].mxu0
        %v1315 = vadd.f32 0.0, %v1314
        %1316 = vmatprep.mubr.bf16.mxu0 %v1117
        %1317 = vmatmul.mubr.bf16.gmra.mrb[0].mxu0 %v1116
        %v1318 = vpop.f32.mrb[0].mxu0
        %v1319 = vadd.f32 0.0, %v1318
        %v1320 = vpop.f32.mrb[0].mxu0
        %v1321 = vadd.f32 0.0, %v1320
        %v1322 = vpop.f32.mrb[0].mxu0
        %v1323 = vadd.f32 0.0, %v1322
        %v1324 = vpop.f32.mrb[0].mxu0
        %v1325 = vadd.f32 0.0, %v1324
        %1326 = vmatprep.mubr.bf16.mxu0 %v1119
        %1327 = vmatmul.mubr.bf16.gmra.mrb[0].mxu0 %v1118
        %v1328 = vpop.f32.mrb[0].mxu0
        %v1329 = vadd.f32 0.0, %v1328
        %v1330 = vpop.f32.mrb[0].mxu0
        %v1331 = vadd.f32 0.0, %v1330
        %v1332 = vpop.f32.mrb[0].mxu0
        %v1333 = vadd.f32 0.0, %v1332
        %v1334 = vpop.f32.mrb[0].mxu0
        %v1335 = vadd.f32 0.0, %v1334
        %1336 = vmatprep.mubr.bf16.mxu0 %v1121
        %1337 = vmatmul.mubr.bf16.gmra.mrb[0].mxu0 %v1120
        %v1338 = vpop.f32.mrb[0].mxu0
        %v1339 = vadd.f32 0.0, %v1338
        %v1340 = vpop.f32.mrb[0].mxu0
        %v1341 = vadd.f32 0.0, %v1340
        %v1342 = vpop.f32.mrb[0].mxu0
        %v1343 = vadd.f32 0.0, %v1342
        %v1344 = vpop.f32.mrb[0].mxu0
        %v1345 = vadd.f32 0.0, %v1344
        %1346 = vdwg.mxu0
        %v1347 = vadd.f32 %v866, %v1189
        %v1348 = vadd.f32 %v867, %v1191
        %v1349 = vadd.f32 %v868, %v1193
        %v1350 = vadd.f32 %v869, %v1195
        %v1351 = vadd.f32 %v870, %v1199
        %v1352 = vadd.f32 %v871, %v1201
        %v1353 = vadd.f32 %v872, %v1203
        %v1354 = vadd.f32 %v873, %v1205
        %v1355 = vadd.f32 %v874, %v1209
        %v1356 = vadd.f32 %v875, %v1211
        %v1357 = vadd.f32 %v876, %v1213
        %v1358 = vadd.f32 %v877, %v1215
        %v1359 = vadd.f32 %v878, %v1219
        %v1360 = vadd.f32 %v879, %v1221
        %v1361 = vadd.f32 %v880, %v1223
        %v1362 = vadd.f32 %v881, %v1225
        %v1363 = vadd.f32 %v882, %v1229
        %v1364 = vadd.f32 %v883, %v1231
        %v1365 = vadd.f32 %v884, %v1233
        %v1366 = vadd.f32 %v885, %v1235
        %v1367 = vadd.f32 %v886, %v1239
        %v1368 = vadd.f32 %v887, %v1241
        %v1369 = vadd.f32 %v888, %v1243
        %v1370 = vadd.f32 %v889, %v1245
        %v1371 = vadd.f32 %v890, %v1249
        %v1372 = vadd.f32 %v891, %v1251
        %v1373 = vadd.f32 %v892, %v1253
        %v1374 = vadd.f32 %v893, %v1255
        %v1375 = vadd.f32 %v894, %v1259
        %v1376 = vadd.f32 %v895, %v1261
        %v1377 = vadd.f32 %v896, %v1263
        %v1378 = vadd.f32 %v897, %v1265
        %v1379 = vadd.f32 %v898, %v1269
        %v1380 = vadd.f32 %v899, %v1271
        %v1381 = vadd.f32 %v900, %v1273
        %v1382 = vadd.f32 %v901, %v1275
        %v1383 = vadd.f32 %v902, %v1279
        %v1384 = vadd.f32 %v903, %v1281
        %v1385 = vadd.f32 %v904, %v1283
        %v1386 = vadd.f32 %v905, %v1285
        %v1387 = vadd.f32 %v906, %v1289
        %v1388 = vadd.f32 %v907, %v1291
        %v1389 = vadd.f32 %v908, %v1293
        %v1390 = vadd.f32 %v909, %v1295
        %v1391 = vadd.f32 %v910, %v1299
        %v1392 = vadd.f32 %v911, %v1301
        %v1393 = vadd.f32 %v912, %v1303
        %v1394 = vadd.f32 %v913, %v1305
        %v1395 = vadd.f32 %v914, %v1309
        %v1396 = vadd.f32 %v915, %v1311
        %v1397 = vadd.f32 %v916, %v1313
        %v1398 = vadd.f32 %v917, %v1315
        %v1399 = vadd.f32 %v918, %v1319
        %v1400 = vadd.f32 %v919, %v1321
        %v1401 = vadd.f32 %v920, %v1323
        %v1402 = vadd.f32 %v921, %v1325
        %v1403 = vadd.f32 %v922, %v1329
        %v1404 = vadd.f32 %v923, %v1331
        %v1405 = vadd.f32 %v924, %v1333
        %v1406 = vadd.f32 %v925, %v1335
        %v1407 = vadd.f32 %v926, %v1339
        %v1408 = vadd.f32 %v927, %v1341
        %v1409 = vadd.f32 %v928, %v1343
        %v1410 = vadd.f32 %v929, %v1345
        %1411 = vst [vmem:[#allocation2] sm:$0xff] %v1347
        %1412 = vst [vmem:[#allocation2 + $0x8] sm:$0xff] %v1348
        %1413 = vst [vmem:[#allocation2 + $0x10] sm:$0xff] %v1349
        %1414 = vst [vmem:[#allocation2 + $0x18] sm:$0xff] %v1350
        %1415 = vst [vmem:[#allocation2 + $0x20] sm:$0xff] %v1351
        %1416 = vst [vmem:[#allocation2 + $0x28] sm:$0xff] %v1352
        %1417 = vst [vmem:[#allocation2 + $0x30] sm:$0xff] %v1353
        %1418 = vst [vmem:[#allocation2 + $0x38] sm:$0xff] %v1354
        %1419 = vst [vmem:[#allocation2 + $0x40] sm:$0xff] %v1355
        %1420 = vst [vmem:[#allocation2 + $0x48] sm:$0xff] %v1356
        %1421 = vst [vmem:[#allocation2 + $0x50] sm:$0xff] %v1357
        %1422 = vst [vmem:[#allocation2 + $0x58] sm:$0xff] %v1358
        %1423 = vst [vmem:[#allocation2 + $0x60] sm:$0xff] %v1359
        %1424 = vst [vmem:[#allocation2 + $0x68] sm:$0xff] %v1360
        %1425 = vst [vmem:[#allocation2 + $0x70] sm:$0xff] %v1361
        %1426 = vst [vmem:[#allocation2 + $0x78] sm:$0xff] %v1362
        %1427 = vst [vmem:[#allocation2 + $0x80] sm:$0xff] %v1363
        %1428 = vst [vmem:[#allocation2 + $0x88] sm:$0xff] %v1364
        %1429 = vst [vmem:[#allocation2 + $0x90] sm:$0xff] %v1365
        %1430 = vst [vmem:[#allocation2 + $0x98] sm:$0xff] %v1366
        %1431 = vst [vmem:[#allocation2 + $0xa0] sm:$0xff] %v1367
        %1432 = vst [vmem:[#allocation2 + $0xa8] sm:$0xff] %v1368
        %1433 = vst [vmem:[#allocation2 + $0xb0] sm:$0xff] %v1369
        %1434 = vst [vmem:[#allocation2 + $0xb8] sm:$0xff] %v1370
        %1435 = vst [vmem:[#allocation2 + $0xc0] sm:$0xff] %v1371
        %1436 = vst [vmem:[#allocation2 + $0xc8] sm:$0xff] %v1372
        %1437 = vst [vmem:[#allocation2 + $0xd0] sm:$0xff] %v1373
        %1438 = vst [vmem:[#allocation2 + $0xd8] sm:$0xff] %v1374
        %1439 = vst [vmem:[#allocation2 + $0xe0] sm:$0xff] %v1375
        %1440 = vst [vmem:[#allocation2 + $0xe8] sm:$0xff] %v1376
        %1441 = vst [vmem:[#allocation2 + $0xf0] sm:$0xff] %v1377
        %1442 = vst [vmem:[#allocation2 + $0xf8] sm:$0xff] %v1378
        %1443 = vst [vmem:[#allocation2 + $0x100] sm:$0xff] %v1379
        %1444 = vst [vmem:[#allocation2 + $0x108] sm:$0xff] %v1380
        %1445 = vst [vmem:[#allocation2 + $0x110] sm:$0xff] %v1381
        %1446 = vst [vmem:[#allocation2 + $0x118] sm:$0xff] %v1382
        %1447 = vst [vmem:[#allocation2 + $0x120] sm:$0xff] %v1383
        %1448 = vst [vmem:[#allocation2 + $0x128] sm:$0xff] %v1384
        %1449 = vst [vmem:[#allocation2 + $0x130] sm:$0xff] %v1385
        %1450 = vst [vmem:[#allocation2 + $0x138] sm:$0xff] %v1386
        %1451 = vst [vmem:[#allocation2 + $0x140] sm:$0xff] %v1387
        %1452 = vst [vmem:[#allocation2 + $0x148] sm:$0xff] %v1388
        %1453 = vst [vmem:[#allocation2 + $0x150] sm:$0xff] %v1389
        %1454 = vst [vmem:[#allocation2 + $0x158] sm:$0xff] %v1390
        %1455 = vst [vmem:[#allocation2 + $0x160] sm:$0xff] %v1391
        %1456 = vst [vmem:[#allocation2 + $0x168] sm:$0xff] %v1392
        %1457 = vst [vmem:[#allocation2 + $0x170] sm:$0xff] %v1393
        %1458 = vst [vmem:[#allocation2 + $0x178] sm:$0xff] %v1394
        %1459 = vst [vmem:[#allocation2 + $0x180] sm:$0xff] %v1395
        %1460 = vst [vmem:[#allocation2 + $0x188] sm:$0xff] %v1396
        %1461 = vst [vmem:[#allocation2 + $0x190] sm:$0xff] %v1397
        %1462 = vst [vmem:[#allocation2 + $0x198] sm:$0xff] %v1398
        %1463 = vst [vmem:[#allocation2 + $0x1a0] sm:$0xff] %v1399
        %1464 = vst [vmem:[#allocation2 + $0x1a8] sm:$0xff] %v1400
        %1465 = vst [vmem:[#allocation2 + $0x1b0] sm:$0xff] %v1401
        %1466 = vst [vmem:[#allocation2 + $0x1b8] sm:$0xff] %v1402
        %1467 = vst [vmem:[#allocation2 + $0x1c0] sm:$0xff] %v1403
        %1468 = vst [vmem:[#allocation2 + $0x1c8] sm:$0xff] %v1404
        %1469 = vst [vmem:[#allocation2 + $0x1d0] sm:$0xff] %v1405
        %1470 = vst [vmem:[#allocation2 + $0x1d8] sm:$0xff] %v1406
        %1471 = vst [vmem:[#allocation2 + $0x1e0] sm:$0xff] %v1407
        %1472 = vst [vmem:[#allocation2 + $0x1e8] sm:$0xff] %v1408
        %1473 = vst [vmem:[#allocation2 + $0x1f0] sm:$0xff] %v1409
        %1474 = vst [vmem:[#allocation2 + $0x1f8] sm:$0xff] %v1410
        %p1475 = scmp.eq.s32.totalorder %s33, 2
        // Predicated region
        $region65: #{tpu_custom_call.1} parent=39 // pred_check
          %p1476 = pneg %p1475
        $region66: #{tpu_custom_call.1} parent=39 // pred_check_branch
          %1478 = sbr.rel (%p1476) target = $region68
        $region67: #{tpu_custom_call.1} parent=39 // pred_region
          %v1479 = vld [vmem:[#allocation2] sm:$0xff]
          %v1480 = vld [vmem:[#allocation2 + $0x8] sm:$0xff]
          %v1481 = vld [vmem:[#allocation2 + $0x10] sm:$0xff]
          %v1482 = vld [vmem:[#allocation2 + $0x18] sm:$0xff]
          %v1483 = vld [vmem:[#allocation2 + $0x20] sm:$0xff]
          %v1484 = vld [vmem:[#allocation2 + $0x28] sm:$0xff]
          %v1485 = vld [vmem:[#allocation2 + $0x30] sm:$0xff]
          %v1486 = vld [vmem:[#allocation2 + $0x38] sm:$0xff]
          %v1487 = vld [vmem:[#allocation2 + $0x40] sm:$0xff]
          %v1488 = vld [vmem:[#allocation2 + $0x48] sm:$0xff]
          %v1489 = vld [vmem:[#allocation2 + $0x50] sm:$0xff]
          %v1490 = vld [vmem:[#allocation2 + $0x58] sm:$0xff]
          %v1491 = vld [vmem:[#allocation2 + $0x60] sm:$0xff]
          %v1492 = vld [vmem:[#allocation2 + $0x68] sm:$0xff]
          %v1493 = vld [vmem:[#allocation2 + $0x70] sm:$0xff]
          %v1494 = vld [vmem:[#allocation2 + $0x78] sm:$0xff]
          %v1495 = vld [vmem:[#allocation2 + $0x80] sm:$0xff]
          %v1496 = vld [vmem:[#allocation2 + $0x88] sm:$0xff]
          %v1497 = vld [vmem:[#allocation2 + $0x90] sm:$0xff]
          %v1498 = vld [vmem:[#allocation2 + $0x98] sm:$0xff]
          %v1499 = vld [vmem:[#allocation2 + $0xa0] sm:$0xff]
          %v1500 = vld [vmem:[#allocation2 + $0xa8] sm:$0xff]
          %v1501 = vld [vmem:[#allocation2 + $0xb0] sm:$0xff]
          %v1502 = vld [vmem:[#allocation2 + $0xb8] sm:$0xff]
          %v1503 = vld [vmem:[#allocation2 + $0xc0] sm:$0xff]
          %v1504 = vld [vmem:[#allocation2 + $0xc8] sm:$0xff]
          %v1505 = vld [vmem:[#allocation2 + $0xd0] sm:$0xff]
          %v1506 = vld [vmem:[#allocation2 + $0xd8] sm:$0xff]
          %v1507 = vld [vmem:[#allocation2 + $0xe0] sm:$0xff]
          %v1508 = vld [vmem:[#allocation2 + $0xe8] sm:$0xff]
          %v1509 = vld [vmem:[#allocation2 + $0xf0] sm:$0xff]
          %v1510 = vld [vmem:[#allocation2 + $0xf8] sm:$0xff]
          %v1511 = vld [vmem:[#allocation2 + $0x100] sm:$0xff]
          %v1512 = vld [vmem:[#allocation2 + $0x108] sm:$0xff]
          %v1513 = vld [vmem:[#allocation2 + $0x110] sm:$0xff]
          %v1514 = vld [vmem:[#allocation2 + $0x118] sm:$0xff]
          %v1515 = vld [vmem:[#allocation2 + $0x120] sm:$0xff]
          %v1516 = vld [vmem:[#allocation2 + $0x128] sm:$0xff]
          %v1517 = vld [vmem:[#allocation2 + $0x130] sm:$0xff]
          %v1518 = vld [vmem:[#allocation2 + $0x138] sm:$0xff]
          %v1519 = vld [vmem:[#allocation2 + $0x140] sm:$0xff]
          %v1520 = vld [vmem:[#allocation2 + $0x148] sm:$0xff]
          %v1521 = vld [vmem:[#allocation2 + $0x150] sm:$0xff]
          %v1522 = vld [vmem:[#allocation2 + $0x158] sm:$0xff]
          %v1523 = vld [vmem:[#allocation2 + $0x160] sm:$0xff]
          %v1524 = vld [vmem:[#allocation2 + $0x168] sm:$0xff]
          %v1525 = vld [vmem:[#allocation2 + $0x170] sm:$0xff]
          %v1526 = vld [vmem:[#allocation2 + $0x178] sm:$0xff]
          %v1527 = vld [vmem:[#allocation2 + $0x180] sm:$0xff]
          %v1528 = vld [vmem:[#allocation2 + $0x188] sm:$0xff]
          %v1529 = vld [vmem:[#allocation2 + $0x190] sm:$0xff]
          %v1530 = vld [vmem:[#allocation2 + $0x198] sm:$0xff]
          %v1531 = vld [vmem:[#allocation2 + $0x1a0] sm:$0xff]
          %v1532 = vld [vmem:[#allocation2 + $0x1a8] sm:$0xff]
          %v1533 = vld [vmem:[#allocation2 + $0x1b0] sm:$0xff]
          %v1534 = vld [vmem:[#allocation2 + $0x1b8] sm:$0xff]
          %v1535 = vld [vmem:[#allocation2 + $0x1c0] sm:$0xff]
          %v1536 = vld [vmem:[#allocation2 + $0x1c8] sm:$0xff]
          %v1537 = vld [vmem:[#allocation2 + $0x1d0] sm:$0xff]
          %v1538 = vld [vmem:[#allocation2 + $0x1d8] sm:$0xff]
          %v1539 = vld [vmem:[#allocation2 + $0x1e0] sm:$0xff]
          %v1540 = vld [vmem:[#allocation2 + $0x1e8] sm:$0xff]
          %v1541 = vld [vmem:[#allocation2 + $0x1f0] sm:$0xff]
          %v1542 = vld [vmem:[#allocation2 + $0x1f8] sm:$0xff]
          %v1543 = vld [vmem:[#allocation9] sm:$0x3]
          %v1545 = vlaneseq
          %v1546 = vshrl.u32 %v1545, 7
          %v1547 = vsub.s32 0, %v1546
          %v1548 = vrot.slane %v1543, %v1547
          %v1549 = vlaneseq
          %v1550 = vshrl.u32 %v1549, 7
          %v1551 = vsub.s32 1, %v1550
          %v1552 = vrot.slane %v1543, %v1551
          %v1555 = vmul.f32 %v1479, %v1548
          %v1556 = vmul.f32 %v1480, %v1552
          %v1557 = vmul.f32 %v1481, %v1548
          %v1558 = vmul.f32 %v1482, %v1552
          %v1559 = vmul.f32 %v1483, %v1548
          %v1560 = vmul.f32 %v1484, %v1552
          %v1561 = vmul.f32 %v1485, %v1548
          %v1562 = vmul.f32 %v1486, %v1552
          %v1563 = vmul.f32 %v1487, %v1548
          %v1564 = vmul.f32 %v1488, %v1552
          %v1565 = vmul.f32 %v1489, %v1548
          %v1566 = vmul.f32 %v1490, %v1552
          %v1567 = vmul.f32 %v1491, %v1548
          %v1568 = vmul.f32 %v1492, %v1552
          %v1569 = vmul.f32 %v1493, %v1548
          %v1570 = vmul.f32 %v1494, %v1552
          %v1571 = vmul.f32 %v1495, %v1548
          %v1572 = vmul.f32 %v1496, %v1552
          %v1573 = vmul.f32 %v1497, %v1548
          %v1574 = vmul.f32 %v1498, %v1552
          %v1575 = vmul.f32 %v1499, %v1548
          %v1576 = vmul.f32 %v1500, %v1552
          %v1577 = vmul.f32 %v1501, %v1548
          %v1578 = vmul.f32 %v1502, %v1552
          %v1579 = vmul.f32 %v1503, %v1548
          %v1580 = vmul.f32 %v1504, %v1552
          %v1581 = vmul.f32 %v1505, %v1548
          %v1582 = vmul.f32 %v1506, %v1552
          %v1583 = vmul.f32 %v1507, %v1548
          %v1584 = vmul.f32 %v1508, %v1552
          %v1585 = vmul.f32 %v1509, %v1548
          %v1586 = vmul.f32 %v1510, %v1552
          %v1587 = vmul.f32 %v1511, %v1548
          %v1588 = vmul.f32 %v1512, %v1552
          %v1589 = vmul.f32 %v1513, %v1548
          %v1590 = vmul.f32 %v1514, %v1552
          %v1591 = vmul.f32 %v1515, %v1548
          %v1592 = vmul.f32 %v1516, %v1552
          %v1593 = vmul.f32 %v1517, %v1548
          %v1594 = vmul.f32 %v1518, %v1552
          %v1595 = vmul.f32 %v1519, %v1548
          %v1596 = vmul.f32 %v1520, %v1552
          %v1597 = vmul.f32 %v1521, %v1548
          %v1598 = vmul.f32 %v1522, %v1552
          %v1599 = vmul.f32 %v1523, %v1548
          %v1600 = vmul.f32 %v1524, %v1552
          %v1601 = vmul.f32 %v1525, %v1548
          %v1602 = vmul.f32 %v1526, %v1552
          %v1603 = vmul.f32 %v1527, %v1548
          %v1604 = vmul.f32 %v1528, %v1552
          %v1605 = vmul.f32 %v1529, %v1548
          %v1606 = vmul.f32 %v1530, %v1552
          %v1607 = vmul.f32 %v1531, %v1548
          %v1608 = vmul.f32 %v1532, %v1552
          %v1609 = vmul.f32 %v1533, %v1548
          %v1610 = vmul.f32 %v1534, %v1552
          %v1611 = vmul.f32 %v1535, %v1548
          %v1612 = vmul.f32 %v1536, %v1552
          %v1613 = vmul.f32 %v1537, %v1548
          %v1614 = vmul.f32 %v1538, %v1552
          %v1615 = vmul.f32 %v1539, %v1548
          %v1616 = vmul.f32 %v1540, %v1552
          %v1617 = vmul.f32 %v1541, %v1548
          %v1618 = vmul.f32 %v1542, %v1552
          %v1619 = vld [vmem:[#allocation11] sm:$0x3]
          %v1621 = vlaneseq
          %v1622 = vshrl.u32 %v1621, 7
          %v1623 = vsub.s32 0, %v1622
          %v1624 = vrot.slane %v1619, %v1623
          %v1625 = vlaneseq
          %v1626 = vshrl.u32 %v1625, 7
          %v1627 = vsub.s32 1, %v1626
          %v1628 = vrot.slane %v1619, %v1627
          %v1631 = vadd.f32 %v1555, %v1624
          %v1632 = vadd.f32 %v1556, %v1628
          %v1633 = vadd.f32 %v1557, %v1624
          %v1634 = vadd.f32 %v1558, %v1628
          %v1635 = vadd.f32 %v1559, %v1624
          %v1636 = vadd.f32 %v1560, %v1628
          %v1637 = vadd.f32 %v1561, %v1624
          %v1638 = vadd.f32 %v1562, %v1628
          %v1639 = vadd.f32 %v1563, %v1624
          %v1640 = vadd.f32 %v1564, %v1628
          %v1641 = vadd.f32 %v1565, %v1624
          %v1642 = vadd.f32 %v1566, %v1628
          %v1643 = vadd.f32 %v1567, %v1624
          %v1644 = vadd.f32 %v1568, %v1628
          %v1645 = vadd.f32 %v1569, %v1624
          %v1646 = vadd.f32 %v1570, %v1628
          %v1647 = vadd.f32 %v1571, %v1624
          %v1648 = vadd.f32 %v1572, %v1628
          %v1649 = vadd.f32 %v1573, %v1624
          %v1650 = vadd.f32 %v1574, %v1628
          %v1651 = vadd.f32 %v1575, %v1624
          %v1652 = vadd.f32 %v1576, %v1628
          %v1653 = vadd.f32 %v1577, %v1624
          %v1654 = vadd.f32 %v1578, %v1628
          %v1655 = vadd.f32 %v1579, %v1624
          %v1656 = vadd.f32 %v1580, %v1628
          %v1657 = vadd.f32 %v1581, %v1624
          %v1658 = vadd.f32 %v1582, %v1628
          %v1659 = vadd.f32 %v1583, %v1624
          %v1660 = vadd.f32 %v1584, %v1628
          %v1661 = vadd.f32 %v1585, %v1624
          %v1662 = vadd.f32 %v1586, %v1628
          %v1663 = vadd.f32 %v1587, %v1624
          %v1664 = vadd.f32 %v1588, %v1628
          %v1665 = vadd.f32 %v1589, %v1624
          %v1666 = vadd.f32 %v1590, %v1628
          %v1667 = vadd.f32 %v1591, %v1624
          %v1668 = vadd.f32 %v1592, %v1628
          %v1669 = vadd.f32 %v1593, %v1624
          %v1670 = vadd.f32 %v1594, %v1628
          %v1671 = vadd.f32 %v1595, %v1624
          %v1672 = vadd.f32 %v1596, %v1628
          %v1673 = vadd.f32 %v1597, %v1624
          %v1674 = vadd.f32 %v1598, %v1628
          %v1675 = vadd.f32 %v1599, %v1624
          %v1676 = vadd.f32 %v1600, %v1628
          %v1677 = vadd.f32 %v1601, %v1624
          %v1678 = vadd.f32 %v1602, %v1628
          %v1679 = vadd.f32 %v1603, %v1624
          %v1680 = vadd.f32 %v1604, %v1628
          %v1681 = vadd.f32 %v1605, %v1624
          %v1682 = vadd.f32 %v1606, %v1628
          %v1683 = vadd.f32 %v1607, %v1624
          %v1684 = vadd.f32 %v1608, %v1628
          %v1685 = vadd.f32 %v1609, %v1624
          %v1686 = vadd.f32 %v1610, %v1628
          %v1687 = vadd.f32 %v1611, %v1624
          %v1688 = vadd.f32 %v1612, %v1628
          %v1689 = vadd.f32 %v1613, %v1624
          %v1690 = vadd.f32 %v1614, %v1628
          %v1691 = vadd.f32 %v1615, %v1624
          %v1692 = vadd.f32 %v1616, %v1628
          %v1693 = vadd.f32 %v1617, %v1624
          %v1694 = vadd.f32 %v1618, %v1628
          %v1695 = vmax.f32 %v1631, 0.0
          %v1696 = vmax.f32 %v1632, 0.0
          %v1697 = vmax.f32 %v1633, 0.0
          %v1698 = vmax.f32 %v1634, 0.0
          %v1699 = vmax.f32 %v1635, 0.0
          %v1700 = vmax.f32 %v1636, 0.0
          %v1701 = vmax.f32 %v1637, 0.0
          %v1702 = vmax.f32 %v1638, 0.0
          %v1703 = vmax.f32 %v1639, 0.0
          %v1704 = vmax.f32 %v1640, 0.0
          %v1705 = vmax.f32 %v1641, 0.0
          %v1706 = vmax.f32 %v1642, 0.0
          %v1707 = vmax.f32 %v1643, 0.0
          %v1708 = vmax.f32 %v1644, 0.0
          %v1709 = vmax.f32 %v1645, 0.0
          %v1710 = vmax.f32 %v1646, 0.0
          %v1711 = vmax.f32 %v1647, 0.0
          %v1712 = vmax.f32 %v1648, 0.0
          %v1713 = vmax.f32 %v1649, 0.0
          %v1714 = vmax.f32 %v1650, 0.0
          %v1715 = vmax.f32 %v1651, 0.0
          %v1716 = vmax.f32 %v1652, 0.0
          %v1717 = vmax.f32 %v1653, 0.0
          %v1718 = vmax.f32 %v1654, 0.0
          %v1719 = vmax.f32 %v1655, 0.0
          %v1720 = vmax.f32 %v1656, 0.0
          %v1721 = vmax.f32 %v1657, 0.0
          %v1722 = vmax.f32 %v1658, 0.0
          %v1723 = vmax.f32 %v1659, 0.0
          %v1724 = vmax.f32 %v1660, 0.0
          %v1725 = vmax.f32 %v1661, 0.0
          %v1726 = vmax.f32 %v1662, 0.0
          %v1727 = vmax.f32 %v1663, 0.0
          %v1728 = vmax.f32 %v1664, 0.0
          %v1729 = vmax.f32 %v1665, 0.0
          %v1730 = vmax.f32 %v1666, 0.0
          %v1731 = vmax.f32 %v1667, 0.0
          %v1732 = vmax.f32 %v1668, 0.0
          %v1733 = vmax.f32 %v1669, 0.0
          %v1734 = vmax.f32 %v1670, 0.0
          %v1735 = vmax.f32 %v1671, 0.0
          %v1736 = vmax.f32 %v1672, 0.0
          %v1737 = vmax.f32 %v1673, 0.0
          %v1738 = vmax.f32 %v1674, 0.0
          %v1739 = vmax.f32 %v1675, 0.0
          %v1740 = vmax.f32 %v1676, 0.0
          %v1741 = vmax.f32 %v1677, 0.0
          %v1742 = vmax.f32 %v1678, 0.0
          %v1743 = vmax.f32 %v1679, 0.0
          %v1744 = vmax.f32 %v1680, 0.0
          %v1745 = vmax.f32 %v1681, 0.0
          %v1746 = vmax.f32 %v1682, 0.0
          %v1747 = vmax.f32 %v1683, 0.0
          %v1748 = vmax.f32 %v1684, 0.0
          %v1749 = vmax.f32 %v1685, 0.0
          %v1750 = vmax.f32 %v1686, 0.0
          %v1751 = vmax.f32 %v1687, 0.0
          %v1752 = vmax.f32 %v1688, 0.0
          %v1753 = vmax.f32 %v1689, 0.0
          %v1754 = vmax.f32 %v1690, 0.0
          %v1755 = vmax.f32 %v1691, 0.0
          %v1756 = vmax.f32 %v1692, 0.0
          %v1757 = vmax.f32 %v1693, 0.0
          %v1758 = vmax.f32 %v1694, 0.0
          %v1759 = vpack.c.bf16 %v1697, %v1695
          %v1760 = vpack.c.bf16 %v1698, %v1696
          %v1761 = vpack.c.bf16 %v1701, %v1699
          %v1762 = vpack.c.bf16 %v1702, %v1700
          %v1763 = vpack.c.bf16 %v1705, %v1703
          %v1764 = vpack.c.bf16 %v1706, %v1704
          %v1765 = vpack.c.bf16 %v1709, %v1707
          %v1766 = vpack.c.bf16 %v1710, %v1708
          %v1767 = vpack.c.bf16 %v1713, %v1711
          %v1768 = vpack.c.bf16 %v1714, %v1712
          %v1769 = vpack.c.bf16 %v1717, %v1715
          %v1770 = vpack.c.bf16 %v1718, %v1716
          %v1771 = vpack.c.bf16 %v1721, %v1719
          %v1772 = vpack.c.bf16 %v1722, %v1720
          %v1773 = vpack.c.bf16 %v1725, %v1723
          %v1774 = vpack.c.bf16 %v1726, %v1724
          %v1775 = vpack.c.bf16 %v1729, %v1727
          %v1776 = vpack.c.bf16 %v1730, %v1728
          %v1777 = vpack.c.bf16 %v1733, %v1731
          %v1778 = vpack.c.bf16 %v1734, %v1732
          %v1779 = vpack.c.bf16 %v1737, %v1735
          %v1780 = vpack.c.bf16 %v1738, %v1736
          %v1781 = vpack.c.bf16 %v1741, %v1739
          %v1782 = vpack.c.bf16 %v1742, %v1740
          %v1783 = vpack.c.bf16 %v1745, %v1743
          %v1784 = vpack.c.bf16 %v1746, %v1744
          %v1785 = vpack.c.bf16 %v1749, %v1747
          %v1786 = vpack.c.bf16 %v1750, %v1748
          %v1787 = vpack.c.bf16 %v1753, %v1751
          %v1788 = vpack.c.bf16 %v1754, %v1752
          %v1789 = vpack.c.bf16 %v1757, %v1755
          %v1790 = vpack.c.bf16 %v1758, %v1756
          %v1823 = vunpack.c.l.b16 %v1759
          %v1824 = vunpack.c.l.b16 %v1760
          %v1825 = vunpack.c.h.b16 %v1759
          %v1826 = vunpack.c.h.b16 %v1760
          %v1827 = vunpack.c.l.b16 %v1761
          %v1828 = vunpack.c.l.b16 %v1762
          %v1829 = vunpack.c.h.b16 %v1761
          %v1830 = vunpack.c.h.b16 %v1762
          %v1831 = vunpack.c.l.b16 %v1763
          %v1832 = vunpack.c.l.b16 %v1764
          %v1833 = vunpack.c.h.b16 %v1763
          %v1834 = vunpack.c.h.b16 %v1764
          %v1835 = vunpack.c.l.b16 %v1765
          %v1836 = vunpack.c.l.b16 %v1766
          %v1837 = vunpack.c.h.b16 %v1765
          %v1838 = vunpack.c.h.b16 %v1766
          %v1839 = vunpack.c.l.b16 %v1767
          %v1840 = vunpack.c.l.b16 %v1768
          %v1841 = vunpack.c.h.b16 %v1767
          %v1842 = vunpack.c.h.b16 %v1768
          %v1843 = vunpack.c.l.b16 %v1769
          %v1844 = vunpack.c.l.b16 %v1770
          %v1845 = vunpack.c.h.b16 %v1769
          %v1846 = vunpack.c.h.b16 %v1770
          %v1847 = vunpack.c.l.b16 %v1771
          %v1848 = vunpack.c.l.b16 %v1772
          %v1849 = vunpack.c.h.b16 %v1771
          %v1850 = vunpack.c.h.b16 %v1772
          %v1851 = vunpack.c.l.b16 %v1773
          %v1852 = vunpack.c.l.b16 %v1774
          %v1853 = vunpack.c.h.b16 %v1773
          %v1854 = vunpack.c.h.b16 %v1774
          %v1855 = vunpack.c.l.b16 %v1775
          %v1856 = vunpack.c.l.b16 %v1776
          %v1857 = vunpack.c.h.b16 %v1775
          %v1858 = vunpack.c.h.b16 %v1776
          %v1859 = vunpack.c.l.b16 %v1777
          %v1860 = vunpack.c.l.b16 %v1778
          %v1861 = vunpack.c.h.b16 %v1777
          %v1862 = vunpack.c.h.b16 %v1778
          %v1863 = vunpack.c.l.b16 %v1779
          %v1864 = vunpack.c.l.b16 %v1780
          %v1865 = vunpack.c.h.b16 %v1779
          %v1866 = vunpack.c.h.b16 %v1780
          %v1867 = vunpack.c.l.b16 %v1781
          %v1868 = vunpack.c.l.b16 %v1782
          %v1869 = vunpack.c.h.b16 %v1781
          %v1870 = vunpack.c.h.b16 %v1782
          %v1871 = vunpack.c.l.b16 %v1783
          %v1872 = vunpack.c.l.b16 %v1784
          %v1873 = vunpack.c.h.b16 %v1783
          %v1874 = vunpack.c.h.b16 %v1784
          %v1875 = vunpack.c.l.b16 %v1785
          %v1876 = vunpack.c.l.b16 %v1786
          %v1877 = vunpack.c.h.b16 %v1785
          %v1878 = vunpack.c.h.b16 %v1786
          %v1879 = vunpack.c.l.b16 %v1787
          %v1880 = vunpack.c.l.b16 %v1788
          %v1881 = vunpack.c.h.b16 %v1787
          %v1882 = vunpack.c.h.b16 %v1788
          %v1883 = vunpack.c.l.b16 %v1789
          %v1884 = vunpack.c.l.b16 %v1790
          %v1885 = vunpack.c.h.b16 %v1789
          %v1886 = vunpack.c.h.b16 %v1790
          %v1887 = vpack.c.b16 %v1824, %v1823
          %v1888 = vpack.c.b16 %v1826, %v1825
          %v1889 = vpack.c.b16 %v1828, %v1827
          %v1890 = vpack.c.b16 %v1830, %v1829
          %v1891 = vpack.c.b16 %v1832, %v1831
          %v1892 = vpack.c.b16 %v1834, %v1833
          %v1893 = vpack.c.b16 %v1836, %v1835
          %v1894 = vpack.c.b16 %v1838, %v1837
          %v1895 = vpack.c.b16 %v1840, %v1839
          %v1896 = vpack.c.b16 %v1842, %v1841
          %v1897 = vpack.c.b16 %v1844, %v1843
          %v1898 = vpack.c.b16 %v1846, %v1845
          %v1899 = vpack.c.b16 %v1848, %v1847
          %v1900 = vpack.c.b16 %v1850, %v1849
          %v1901 = vpack.c.b16 %v1852, %v1851
          %v1902 = vpack.c.b16 %v1854, %v1853
          %v1903 = vpack.c.b16 %v1856, %v1855
          %v1904 = vpack.c.b16 %v1858, %v1857
          %v1905 = vpack.c.b16 %v1860, %v1859
          %v1906 = vpack.c.b16 %v1862, %v1861
          %v1907 = vpack.c.b16 %v1864, %v1863
          %v1908 = vpack.c.b16 %v1866, %v1865
          %v1909 = vpack.c.b16 %v1868, %v1867
          %v1910 = vpack.c.b16 %v1870, %v1869
          %v1911 = vpack.c.b16 %v1872, %v1871
          %v1912 = vpack.c.b16 %v1874, %v1873
          %v1913 = vpack.c.b16 %v1876, %v1875
          %v1914 = vpack.c.b16 %v1878, %v1877
          %v1915 = vpack.c.b16 %v1880, %v1879
          %v1916 = vpack.c.b16 %v1882, %v1881
          %v1917 = vpack.c.b16 %v1884, %v1883
          %v1918 = vpack.c.b16 %v1886, %v1885
          %1951 = vst [vmem:[%s371] sm:$0xff] %v1887
          %1952 = vst [vmem:[%s371 + $0x8] sm:$0xff] %v1888
          %1953 = vst [vmem:[%s371 + $0x10] sm:$0xff] %v1889
          %1954 = vst [vmem:[%s371 + $0x18] sm:$0xff] %v1890
          %1955 = vst [vmem:[%s371 + $0x20] sm:$0xff] %v1891
          %1956 = vst [vmem:[%s371 + $0x28] sm:$0xff] %v1892
          %1957 = vst [vmem:[%s371 + $0x30] sm:$0xff] %v1893
          %1958 = vst [vmem:[%s371 + $0x38] sm:$0xff] %v1894
          %1959 = vst [vmem:[%s371 + $0x40] sm:$0xff] %v1895
          %1960 = vst [vmem:[%s371 + $0x48] sm:$0xff] %v1896
          %1961 = vst [vmem:[%s371 + $0x50] sm:$0xff] %v1897
          %1962 = vst [vmem:[%s371 + $0x58] sm:$0xff] %v1898
          %1963 = vst [vmem:[%s371 + $0x60] sm:$0xff] %v1899
          %1964 = vst [vmem:[%s371 + $0x68] sm:$0xff] %v1900
          %1965 = vst [vmem:[%s371 + $0x70] sm:$0xff] %v1901
          %1966 = vst [vmem:[%s371 + $0x78] sm:$0xff] %v1902
          %1967 = vst [vmem:[%s371 + $0x80] sm:$0xff] %v1903
          %1968 = vst [vmem:[%s371 + $0x88] sm:$0xff] %v1904
          %1969 = vst [vmem:[%s371 + $0x90] sm:$0xff] %v1905
          %1970 = vst [vmem:[%s371 + $0x98] sm:$0xff] %v1906
          %1971 = vst [vmem:[%s371 + $0xa0] sm:$0xff] %v1907
          %1972 = vst [vmem:[%s371 + $0xa8] sm:$0xff] %v1908
          %1973 = vst [vmem:[%s371 + $0xb0] sm:$0xff] %v1909
          %1974 = vst [vmem:[%s371 + $0xb8] sm:$0xff] %v1910
          %1975 = vst [vmem:[%s371 + $0xc0] sm:$0xff] %v1911
          %1976 = vst [vmem:[%s371 + $0xc8] sm:$0xff] %v1912
          %1977 = vst [vmem:[%s371 + $0xd0] sm:$0xff] %v1913
          %1978 = vst [vmem:[%s371 + $0xd8] sm:$0xff] %v1914
          %1979 = vst [vmem:[%s371 + $0xe0] sm:$0xff] %v1915
          %1980 = vst [vmem:[%s371 + $0xe8] sm:$0xff] %v1916
          %1981 = vst [vmem:[%s371 + $0xf0] sm:$0xff] %v1917
          %1982 = vst [vmem:[%s371 + $0xf8] sm:$0xff] %v1918
        $region68: #{tpu_custom_call.1} parent=39 // pred_fallthru
          _
        %s1983 = sand.u32 %s187, 1
        %s1984 = scalar_lea.sflag [#allocation5], %s1983
        %s1985 = sand.u32 %s187, 1
        %s1986 = smul.addr %s1985, 256
        %s1987 = scalar_lea.vmem [#allocation12], %s1986
        // Predicated region
        $region69: #{tpu_custom_call.1} parent=39 // pred_check
          %p1988 = pneg %p197
        $region70: #{tpu_custom_call.1} parent=39 // pred_check_branch
          %1990 = sbr.rel (%p1988) target = $region72
        $region71: #{tpu_custom_call.1} parent=39 // pred_region
          %s1991 = smul.u32 32, %s31
          %s1992 = smul.u32 2, %s32
          %s1994 = ssub.s32 4096, 4096
          %1995 = vsyncadd %s1984, %s1994
          %s1996 = smul.addr %s1991, 2
          %s1997 = sadd.s32 %s1992, %s1996
          %s1998 = smul.addr %s1997, 64
          %s1999 = scalar_lea.hbm %s5, %s1998
          %s2000 = sshll.u32 %s1987, 4
          %s2001 = int_to_ptr.vmem [resolvable:$true] %s2000
          %2006 = dma.vmem_to_hbm [thread:$0]  %s2001, 4096, %s1999, %s1984, 128, 128, 8
        $region72: #{tpu_custom_call.1} parent=39 // pred_fallthru
          _
      $region40: #{tpu_custom_call.1} parent=5 // pred_fallthru
        _
      %p2007 = scmp.le.s32.totalorder 2, %s21
      // Predicated region
      $region73: #{tpu_custom_call.1} parent=5 // pred_check
        %p2008 = pneg %p2007
      $region74: #{tpu_custom_call.1} parent=5 // pred_check_branch
        %2010 = sbr.rel (%p2008) target = $region76
      $region75: #{tpu_custom_call.1} parent=5 // pred_region
        %s2011 = ssub.s32 %s21, 2
        // Predicated region
        $region77: #{tpu_custom_call.1} parent=75 // pred_check
          %p2012 = pneg %p203
        $region78: #{tpu_custom_call.1} parent=75 // pred_check_branch
          %2014 = sbr.rel (%p2012) target = $region80
        $region79: #{tpu_custom_call.1} parent=75 // pred_region
          %s2015 = sand.u32 %s188, 1
          %s2016 = scalar_lea.sflag [#allocation5], %s2015
          %s2017 = sand.u32 %s188, 1
          %s2018 = smul.addr %s2017, 256
          %s2019 = scalar_lea.vmem [#allocation12], %s2018
          %2020 = dma.done %s2016, 4096
        $region80: #{tpu_custom_call.1} parent=75 // pred_fallthru
          _
      $region76: #{tpu_custom_call.1} parent=5 // pred_fallthru
        _
    $region6: #{tpu_custom_call.1} parent=1 // loop_footer
      %s25 = sadd.s32 1, %s21
    $region7: #{tpu_custom_call.1} parent=1 // loop_footer_branch
      %20 = sbr.rel target = $region3
    $region8: #{tpu_custom_call.1} parent=1 // loop_exit
      _
    %2021 = vsyncpa [#allocation4], 1
    %s2022 = scalar_lea.sflag [#allocation4], 1
    %2023 = vsyncpa %s2022, 1
    %2024 = vsyncpa [#allocation7], 1
    %s2025 = scalar_lea.sflag [#allocation7], 1
    %2026 = vsyncpa %s2025, 1
    %2027 = vsyncpa [#allocation10], 1
    %2028 = vsyncpa [#allocation5], 1
    %s2029 = scalar_lea.sflag [#allocation5], 1
    %2030 = vsyncpa %s2029, 1

</llo_original>
